<compile_context>
chip_gen: v6e
topology: v6e:2x2x1
jax: 0.10.0
libtpu: 0.0.40
codegen_flags: <defaults>
</compile_context>

<pallas_src>
import math
from functools import partial

import jax
import jax.numpy as jnp
from jax.experimental import pallas as pl
from jax.experimental.pallas import tpu as pltpu


def _attention_pool_kernel(x_ref, pos0_ref, posr_ref, wq_ref, bq_ref,
                           wkv_ref, bkv_ref, wc_ref, bc_ref, o_ref,
                           tok0_sc, kv_sc, *, n_heads, compute_dtype):
    bt, hw, c = x_ref.shape
    ch = c // n_heads
    d_out = o_ref.shape[-1]
    # PyTorch scales q and k each by 1/ch**0.25; fold both into q once (exact).
    scale2 = 1.0 / math.sqrt(ch)

    pos_rest = posr_ref[...]                  # [HW, C]  f32
    w_kv = wkv_ref[...]                       # [C, 2C]  compute dtype
    b_kv = bkv_ref[...]                       # [1, 2C]  f32

    # --- per batch element: mean token (f32) + K/V projection of the HW spatial
    #     tokens.  q is only needed at token 0, so the big matmul is [HW,C]@[C,2C].
    for bi in range(bt):
        x_b = x_ref[bi].astype(jnp.float32)                       # [HW, C]
        tok0_sc[bi:bi + 1, :] = (jnp.mean(x_b, axis=0, keepdims=True)
                                 + pos0_ref[...])                 # [1, C] f32
        tok_rest = (x_b + pos_rest).astype(compute_dtype)         # [HW, C]
        kv_sc[bi] = jnp.dot(tok_rest, w_kv,
                            preferred_element_type=jnp.float32) + b_kv

    # --- q/k/v of token 0 for the whole batch block (tiny matmuls)
    tok0 = tok0_sc[...].astype(compute_dtype)                     # [Bt, C]
    q0 = (jnp.dot(tok0, wq_ref[...], preferred_element_type=jnp.float32)
          + bq_ref[...]) * scale2                                 # [Bt, C]
    kv0 = (jnp.dot(tok0, w_kv, preferred_element_type=jnp.float32)
           + b_kv)                                                # [Bt, 2C]
    k0 = kv0[:, :c]
    v0 = kv0[:, c:]

    kv = kv_sc[...]                                               # [Bt, HW, 2C] f32

    # --- per-head attention at query position 0 only; softmax in f32.
    acc = jnp.zeros((bt, d_out), jnp.float32)
    for h in range(n_heads):
        lo, hi = h * ch, (h + 1) * ch
        q0h = q0[:, lo:hi]                                        # [Bt, ch]
        k0h = k0[:, lo:hi]
        v0h = v0[:, lo:hi]
        kh = kv[:, :, lo:hi]                                      # [Bt, HW, ch]
        vh = kv[:, :, c + lo:c + hi]                              # [Bt, HW, ch]

        # scores vs. the HW spatial tokens (no explicit transpose)
        s_rest = jnp.einsum('bqc,bkc->bqk', q0h[:, None, :], kh,
                            preferred_element_type=jnp.float32)[:, 0, :]   # [Bt, HW]
        # score vs. token 0 itself
        s0 = jnp.sum(q0h * k0h, axis=-1, keepdims=True)           # [Bt, 1]

        m = jnp.maximum(jnp.max(s_rest, axis=-1, keepdims=True), s0)
        p0 = jnp.exp(s0 - m)                                      # [Bt, 1]
        p_rest = jnp.exp(s_rest - m)                              # [Bt, HW]
        inv = pl.reciprocal(p0 + jnp.sum(p_rest, axis=-1, keepdims=True),
                            approx=True)                          # [Bt, 1]

        pv = jnp.einsum('bqk,bkc->bqc', p_rest[:, None, :], vh,
                        preferred_element_type=jnp.float32)[:, 0, :]       # [Bt, ch]
        a_h = ((p0 * v0h + pv) * inv).astype(compute_dtype)       # [Bt, ch]

        # c_proj contribution of this head (no lane-axis head concat)
        acc = acc + jnp.dot(a_h, wc_ref[lo:hi, :],
                            preferred_element_type=jnp.float32)   # [Bt, D_out]

    o_ref[...] = (acc + bc_ref[...]).astype(o_ref.dtype)


def attention_pool_2d(x_nchw, pos, w_qkv, b_qkv, w_c, b_c, *, n_heads,
                      compute_dtype=jnp.bfloat16, batch_block=8):
    """x_nchw: [B, C, H, W]; pos: [C, HW+1]; w_qkv: [C, 3C]; w_c: [C, D_out]."""
    b, c, h, w = x_nchw.shape
    assert c % n_heads == 0
    hw = h * w
    d_out = w_c.shape[-1]
    out_dtype = x_nchw.dtype

    # batch blocking: `bt` batch elements per grid step.  Keep bt (and the f32 K/V
    # scratch below) small enough to fit VMEM (64 MiB total on v7x).
    bt = max(1, min(b, batch_block))
    b_pad = pl.cdiv(b, bt) * bt

    # token-major [B, HW, C] slab for the kernel, matmul operands in compute_dtype
    x_tok = jnp.transpose(x_nchw.reshape(b, c, hw), (0, 2, 1)).astype(compute_dtype)
    if b_pad != b:
        x_tok = jnp.concatenate(
            [x_tok, jnp.zeros((b_pad - b, hw, c), compute_dtype)], axis=0)

    pos_f = pos.astype(jnp.float32)
    pos0 = jnp.transpose(pos_f[:, :1])                 # [1, C]  (token-0 column)
    pos_rest = jnp.transpose(pos_f[:, 1:])             # [HW, C]

    w_q = w_qkv[:, :c].astype(compute_dtype)           # [C, C]
    w_kv = w_qkv[:, c:].astype(compute_dtype)          # [C, 2C]
    b_q = b_qkv[:c].reshape(1, c).astype(jnp.float32)
    b_kv = b_qkv[c:].reshape(1, 2 * c).astype(jnp.float32)
    wc = w_c.astype(compute_dtype)                     # [C, D_out]
    bc = b_c.reshape(1, d_out).astype(jnp.float32)

    kernel = partial(_attention_pool_kernel, n_heads=n_heads,
                     compute_dtype=compute_dtype)
    out = pl.pallas_call(
        kernel,
        out_shape=jax.ShapeDtypeStruct((b_pad, d_out), out_dtype),
        grid_spec=pltpu.PrefetchScalarGridSpec(
            num_scalar_prefetch=0,
            grid=(b_pad // bt,),
            in_specs=[
                pl.BlockSpec((bt, hw, c), lambda i: (i, 0, 0)),   # x tokens
                pl.BlockSpec((1, c), lambda i: (0, 0)),           # pos token 0
                pl.BlockSpec((hw, c), lambda i: (0, 0)),          # pos tokens 1..HW
                pl.BlockSpec((c, c), lambda i: (0, 0)),           # W_q
                pl.BlockSpec((1, c), lambda i: (0, 0)),           # b_q
                pl.BlockSpec((c, 2 * c), lambda i: (0, 0)),       # W_kv
                pl.BlockSpec((1, 2 * c), lambda i: (0, 0)),       # b_kv
                pl.BlockSpec((c, d_out), lambda i: (0, 0)),       # W_c
                pl.BlockSpec((1, d_out), lambda i: (0, 0)),       # b_c
            ],
            out_specs=pl.BlockSpec((bt, d_out), lambda i: (i, 0)),
            scratch_shapes=[
                pltpu.VMEM((bt, c), jnp.float32),           # token-0 rows
                pltpu.VMEM((bt, hw, 2 * c), jnp.float32),   # K/V of spatial tokens
            ],
        ),
        compiler_params=pltpu.CompilerParams(
            dimension_semantics=("parallel",)),               # independent batch blocks
    )(x_tok, pos0, pos_rest, w_q, b_q, w_kv, b_kv, wc, bc)
    return out[:b]


def attention_pool_2d_reference(x_nchw, pos, w_qkv, b_qkv, w_c, b_c, *, n_heads):
    """Plain-JAX mirror of the PyTorch forward, for correctness checking."""
    b, c = x_nchw.shape[:2]
    x = x_nchw.reshape(b, c, -1)
    x = jnp.concatenate([x.mean(axis=-1, keepdims=True), x], axis=-1)   # [B, C, T]
    x = x + pos[None]
    qkv = jnp.einsum('co,bct->bot', w_qkv, x) + b_qkv[None, :, None]    # [B, 3C, T]
    t = x.shape[-1]
    ch = c // n_heads
    q, k, v = jnp.split(qkv, 3, axis=1)
    q = q.reshape(b * n_heads, ch, t)
    k = k.reshape(b * n_heads, ch, t)
    v = v.reshape(b * n_heads, ch, t)
    scale = 1.0 / math.sqrt(math.sqrt(ch))
    weight = jnp.einsum('bct,bcs->bts', q * scale, k * scale)
    weight = jax.nn.softmax(weight.astype(jnp.float32), axis=-1)
    a = jnp.einsum('bts,bcs->bct', weight, v).reshape(b, c, t)
    out = jnp.einsum('co,bct->bot', w_c, a) + b_c[None, :, None]
    return out[:, :, 0]


if __name__ == "__main__":
    # Module hyperparameters (small, consistent with AttentionPool2d.__init__)
    B = 2
    embed_dim = 8            # == C
    spacial_dim = 8          # H == W
    num_heads_channels = 4
    output_dim = 16
    n_heads = embed_dim // num_heads_channels
    T = spacial_dim ** 2 + 1

    key = jax.random.PRNGKey(0)
    k_x, k_pos, k_wq, k_bq, k_wc, k_bc = jax.random.split(key, 6)

    x = jax.random.normal(k_x, (B, embed_dim, spacial_dim, spacial_dim),
                          dtype=jnp.float32)
    # positional_embedding: randn(embed_dim, spacial_dim**2 + 1) / embed_dim**0.5
    pos = jax.random.normal(k_pos, (embed_dim, T), jnp.float32) / embed_dim ** 0.5
    # qkv_proj (conv1d k=1): weight [3C, C, 1] -> stored transposed as [C, 3C]
    w_qkv = jax.random.normal(k_wq, (embed_dim, 3 * embed_dim), jnp.float32) * 0.1
    b_qkv = jax.random.normal(k_bq, (3 * embed_dim,), jnp.float32) * 0.1
    # c_proj (conv1d k=1): weight [D_out, C, 1] -> stored transposed as [C, D_out]
    w_c = jax.random.normal(k_wc, (embed_dim, output_dim), jnp.float32) * 0.1
    b_c = jax.random.normal(k_bc, (output_dim,), jnp.float32) * 0.1

    ref = attention_pool_2d_reference(x, pos, w_qkv, b_qkv, w_c, b_c,
                                      n_heads=n_heads)
    ref = jax.block_until_ready(ref)

    # f32 compute path: structurally exact (approx reciprocal is the only deviation)
    out_f32 = attention_pool_2d(x, pos, w_qkv, b_qkv, w_c, b_c, n_heads=n_heads,
                                compute_dtype=jnp.float32)
    out_f32 = jax.block_until_ready(out_f32)
    assert out_f32.shape == (B, output_dim), out_f32.shape
    assert jnp.allclose(out_f32, ref, atol=5e-3, rtol=5e-3), \
        f"f32 max err {jnp.max(jnp.abs(out_f32 - ref))}"

    # default bf16 MXU path (f32 accumulation / softmax): looser tolerance
    out_bf16 = attention_pool_2d(x, pos, w_qkv, b_qkv, w_c, b_c, n_heads=n_heads)
    out_bf16 = jax.block_until_ready(out_bf16)
    assert out_bf16.shape == (B, output_dim), out_bf16.shape
    assert jnp.allclose(out_bf16, ref, atol=2e-2, rtol=2e-2), \
        f"bf16 max err {jnp.max(jnp.abs(out_bf16 - ref))}"

    print("KERNEL_OK")
</pallas_src>

<mosaic_0001>
module attributes {stable_mosaic.version = 11 : i64} {
  func.func @_attention_pool_kernel(%arg0: i32, %arg1: memref<2x64x8xf32, #tpu.memory_space<vmem>>, %arg2: memref<1x8xf32, #tpu.memory_space<vmem>>, %arg3: memref<64x8xf32, #tpu.memory_space<vmem>>, %arg4: memref<8x8xf32, #tpu.memory_space<vmem>>, %arg5: memref<1x8xf32, #tpu.memory_space<vmem>>, %arg6: memref<8x16xf32, #tpu.memory_space<vmem>>, %arg7: memref<1x16xf32, #tpu.memory_space<vmem>>, %arg8: memref<8x16xf32, #tpu.memory_space<vmem>>, %arg9: memref<1x16xf32, #tpu.memory_space<vmem>>, %arg10: memref<2x16xf32, #tpu.memory_space<vmem>>, %arg11: memref<2x8xf32, #tpu.memory_space<vmem>>, %arg12: memref<2x64x16xf32, #tpu.memory_space<vmem>>) attributes {dimension_semantics = [#tpu.dimension_semantics<parallel>], iteration_bounds = array<i64: 1>, scalar_prefetch = 0 : i64, scratch_operands = 2 : i64, tpu.core_type = #tpu.core_type<tc>, window_params = [{transform_indices = @transform_0, window_bounds = array<i64: 2, 64, 8>}, {pipeline_mode = #tpu.pipeline_mode<synchronous>, transform_indices = @transform_1, window_bounds = array<i64: 1, 8>}, {pipeline_mode = #tpu.pipeline_mode<synchronous>, transform_indices = @transform_2, window_bounds = array<i64: 64, 8>}, {pipeline_mode = #tpu.pipeline_mode<synchronous>, transform_indices = @transform_3, window_bounds = array<i64: 8, 8>}, {pipeline_mode = #tpu.pipeline_mode<synchronous>, transform_indices = @transform_4, window_bounds = array<i64: 1, 8>}, {pipeline_mode = #tpu.pipeline_mode<synchronous>, transform_indices = @transform_5, window_bounds = array<i64: 8, 16>}, {pipeline_mode = #tpu.pipeline_mode<synchronous>, transform_indices = @transform_6, window_bounds = array<i64: 1, 16>}, {pipeline_mode = #tpu.pipeline_mode<synchronous>, transform_indices = @transform_7, window_bounds = array<i64: 8, 16>}, {pipeline_mode = #tpu.pipeline_mode<synchronous>, transform_indices = @transform_8, window_bounds = array<i64: 1, 16>}, {transform_indices = @transform_9, window_bounds = array<i64: 2, 16>}]} {
    %c0 = arith.constant 0 : index
    %c0_0 = arith.constant 0 : index
    %0 = vector.load %arg3[%c0, %c0_0] : memref<64x8xf32, #tpu.memory_space<vmem>>, vector<64x8xf32>
    %c0_1 = arith.constant 0 : index
    %c0_2 = arith.constant 0 : index
    %1 = vector.load %arg6[%c0_1, %c0_2] : memref<8x16xf32, #tpu.memory_space<vmem>>, vector<8x16xf32>
    %c0_3 = arith.constant 0 : index
    %c0_4 = arith.constant 0 : index
    %2 = vector.load %arg7[%c0_3, %c0_4] : memref<1x16xf32, #tpu.memory_space<vmem>>, vector<1x16xf32>
    %c0_5 = arith.constant 0 : index
    %c0_6 = arith.constant 0 : index
    %c0_7 = arith.constant 0 : index
    %3 = vector.load %arg1[%c0_5, %c0_6, %c0_7] : memref<2x64x8xf32, #tpu.memory_space<vmem>>, vector<1x64x8xf32>
    %4 = vector.shape_cast %3 : vector<1x64x8xf32> to vector<64x8xf32>
    %cst = arith.constant dense<0.000000e+00> : vector<8xf32>
    %5 = vector.multi_reduction <add>, %4, %cst [0] : vector<64x8xf32> to vector<8xf32>
    %6 = vector.shape_cast %5 : vector<8xf32> to vector<1x8xf32>
    %cst_8 = arith.constant 6.400000e+01 : f32
    %7 = vector.broadcast %cst_8 : f32 to vector<1x8xf32>
    %8 = arith.divf %6, %7 : vector<1x8xf32>
    %c0_9 = arith.constant 0 : index
    %c0_10 = arith.constant 0 : index
    %9 = vector.load %arg2[%c0_9, %c0_10] : memref<1x8xf32, #tpu.memory_space<vmem>>, vector<1x8xf32>
    %10 = arith.addf %8, %9 : vector<1x8xf32>
    %c0_11 = arith.constant 0 : index
    %c0_12 = arith.constant 0 : index
    %11 = vector.load %arg11[%c0_11, %c0_12] : memref<2x8xf32, #tpu.memory_space<vmem>>, vector<1x8xf32>
    tpu.vector_store %arg11[%c0_11, %c0_12], %10 {strides = array<i32>} : memref<2x8xf32, #tpu.memory_space<vmem>>, vector<1x8xf32>,
    %12 = arith.addf %4, %0 : vector<64x8xf32>
    %cst_13 = arith.constant dense<0.000000e+00> : vector<64x16xf32>
    %13 = tpu.matmul %12, %1, %cst_13 {dimension_numbers = #tpu.dot_dimension_numbers<[1], [0], [0], [1], [0, 0, 1, 1], [], []>} : vector<64x8xf32>, vector<8x16xf32>, vector<64x16xf32> -> vector<64x16xf32>
    %14 = vector.broadcast %2 : vector<1x16xf32> to vector<64x16xf32>
    %15 = arith.addf %13, %14 : vector<64x16xf32>
    %c0_14 = arith.constant 0 : index
    %c0_15 = arith.constant 0 : index
    %c0_16 = arith.constant 0 : index
    %16 = vector.load %arg12[%c0_14, %c0_15, %c0_16] : memref<2x64x16xf32, #tpu.memory_space<vmem>>, vector<1x64x16xf32>
    %17 = vector.shape_cast %16 : vector<1x64x16xf32> to vector<64x16xf32>
    %18 = vector.shape_cast %15 : vector<64x16xf32> to vector<1x64x16xf32>
    tpu.vector_store %arg12[%c0_14, %c0_15, %c0_16], %18 {strides = array<i32>} : memref<2x64x16xf32, #tpu.memory_space<vmem>>, vector<1x64x16xf32>,
    %c1 = arith.constant 1 : index
    %c0_17 = arith.constant 0 : index
    %c0_18 = arith.constant 0 : index
    %19 = vector.load %arg1[%c1, %c0_17, %c0_18] : memref<2x64x8xf32, #tpu.memory_space<vmem>>, vector<1x64x8xf32>
    %20 = vector.shape_cast %19 : vector<1x64x8xf32> to vector<64x8xf32>
    %cst_19 = arith.constant dense<0.000000e+00> : vector<8xf32>
    %21 = vector.multi_reduction <add>, %20, %cst_19 [0] : vector<64x8xf32> to vector<8xf32>
    %22 = vector.shape_cast %21 : vector<8xf32> to vector<1x8xf32>
    %cst_20 = arith.constant 6.400000e+01 : f32
    %23 = vector.broadcast %cst_20 : f32 to vector<1x8xf32>
    %24 = arith.divf %22, %23 : vector<1x8xf32>
    %c0_21 = arith.constant 0 : index
    %c0_22 = arith.constant 0 : index
    %25 = vector.load %arg2[%c0_21, %c0_22] : memref<1x8xf32, #tpu.memory_space<vmem>>, vector<1x8xf32>
    %26 = arith.addf %24, %25 : vector<1x8xf32>
    %c1_23 = arith.constant 1 : index
    %c0_24 = arith.constant 0 : index
    %27 = vector.load %arg11[%c1_23, %c0_24] : memref<2x8xf32, #tpu.memory_space<vmem>>, vector<1x8xf32>
    tpu.vector_store %arg11[%c1_23, %c0_24], %26 {strides = array<i32>} : memref<2x8xf32, #tpu.memory_space<vmem>>, vector<1x8xf32>,
    %28 = arith.addf %20, %0 : vector<64x8xf32>
    %cst_25 = arith.constant dense<0.000000e+00> : vector<64x16xf32>
    %29 = tpu.matmul %28, %1, %cst_25 {dimension_numbers = #tpu.dot_dimension_numbers<[1], [0], [0], [1], [0, 0, 1, 1], [], []>} : vector<64x8xf32>, vector<8x16xf32>, vector<64x16xf32> -> vector<64x16xf32>
    %30 = vector.broadcast %2 : vector<1x16xf32> to vector<64x16xf32>
    %31 = arith.addf %29, %30 : vector<64x16xf32>
    %c1_26 = arith.constant 1 : index
    %c0_27 = arith.constant 0 : index
    %c0_28 = arith.constant 0 : index
    %32 = vector.load %arg12[%c1_26, %c0_27, %c0_28] : memref<2x64x16xf32, #tpu.memory_space<vmem>>, vector<1x64x16xf32>
    %33 = vector.shape_cast %32 : vector<1x64x16xf32> to vector<64x16xf32>
    %34 = vector.shape_cast %31 : vector<64x16xf32> to vector<1x64x16xf32>
    tpu.vector_store %arg12[%c1_26, %c0_27, %c0_28], %34 {strides = array<i32>} : memref<2x64x16xf32, #tpu.memory_space<vmem>>, vector<1x64x16xf32>,
    %c0_29 = arith.constant 0 : index
    %c0_30 = arith.constant 0 : index
    %35 = vector.load %arg11[%c0_29, %c0_30] : memref<2x8xf32, #tpu.memory_space<vmem>>, vector<2x8xf32>
    %c0_31 = arith.constant 0 : index
    %c0_32 = arith.constant 0 : index
    %36 = vector.load %arg4[%c0_31, %c0_32] : memref<8x8xf32, #tpu.memory_space<vmem>>, vector<8x8xf32>
    %cst_33 = arith.constant dense<0.000000e+00> : vector<2x8xf32>
    %37 = tpu.matmul %35, %36, %cst_33 {dimension_numbers = #tpu.dot_dimension_numbers<[1], [0], [0], [1], [0, 0, 1, 1], [], []>} : vector<2x8xf32>, vector<8x8xf32>, vector<2x8xf32> -> vector<2x8xf32>
    %c0_34 = arith.constant 0 : index
    %c0_35 = arith.constant 0 : index
    %38 = vector.load %arg5[%c0_34, %c0_35] : memref<1x8xf32, #tpu.memory_space<vmem>>, vector<1x8xf32>
    %39 = vector.broadcast %38 : vector<1x8xf32> to vector<2x8xf32>
    %40 = arith.addf %37, %39 : vector<2x8xf32>
    %cst_36 = arith.constant 5.000000e-01 : f32
    %41 = vector.broadcast %cst_36 : f32 to vector<2x8xf32>
    %42 = arith.mulf %40, %41 : vector<2x8xf32>
    %cst_37 = arith.constant dense<0.000000e+00> : vector<2x16xf32>
    %43 = tpu.matmul %35, %1, %cst_37 {dimension_numbers = #tpu.dot_dimension_numbers<[1], [0], [0], [1], [0, 0, 1, 1], [], []>} : vector<2x8xf32>, vector<8x16xf32>, vector<2x16xf32> -> vector<2x16xf32>
    %44 = vector.broadcast %2 : vector<1x16xf32> to vector<2x16xf32>
    %45 = arith.addf %43, %44 : vector<2x16xf32>
    %46 = vector.extract_strided_slice %45 {offsets = [0, 0], sizes = [2, 8], strides = [1, 1]} : vector<2x16xf32> to vector<2x8xf32>
    %47 = vector.extract_strided_slice %45 {offsets = [0, 8], sizes = [2, 8], strides = [1, 1]} : vector<2x16xf32> to vector<2x8xf32>
    %c0_38 = arith.constant 0 : index
    %c0_39 = arith.constant 0 : index
    %c0_40 = arith.constant 0 : index
    %48 = vector.load %arg12[%c0_38, %c0_39, %c0_40] : memref<2x64x16xf32, #tpu.memory_space<vmem>>, vector<2x64x16xf32>
    %cst_41 = arith.constant 0.000000e+00 : f32
    %49 = vector.broadcast %cst_41 : f32 to vector<2x16xf32>
    %50 = vector.extract_strided_slice %42 {offsets = [0, 0], sizes = [2, 4], strides = [1, 1]} : vector<2x8xf32> to vector<2x4xf32>
    %51 = vector.extract_strided_slice %46 {offsets = [0, 0], sizes = [2, 4], strides = [1, 1]} : vector<2x8xf32> to vector<2x4xf32>
    %52 = vector.extract_strided_slice %47 {offsets = [0, 0], sizes = [2, 4], strides = [1, 1]} : vector<2x8xf32> to vector<2x4xf32>
    %53 = vector.extract_strided_slice %48 {offsets = [0, 0, 0], sizes = [2, 64, 4], strides = [1, 1, 1]} : vector<2x64x16xf32> to vector<2x64x4xf32>
    %54 = vector.extract_strided_slice %48 {offsets = [0, 0, 8], sizes = [2, 64, 4], strides = [1, 1, 1]} : vector<2x64x16xf32> to vector<2x64x4xf32>
    %55 = vector.shape_cast %50 : vector<2x4xf32> to vector<2x1x4xf32>
    "tpu.trace_start"() <{level = 10 : i32, message = "bqc,bkc->bqk"}> : () -> ()
    %cst_42 = arith.constant dense<0.000000e+00> : vector<2x1x64xf32>
    %56 = tpu.matmul %55, %53, %cst_42 {dimension_numbers = #tpu.dot_dimension_numbers<[2], [2], [1], [1], [0, 0, 0, 1, 1, 1], [0], [0]>} : vector<2x1x4xf32>, vector<2x64x4xf32>, vector<2x1x64xf32> -> vector<2x1x64xf32>
    "tpu.trace_stop"() : () -> ()
    %57 = vector.shape_cast %56 : vector<2x1x64xf32> to vector<2x64xf32>
    %58 = arith.mulf %50, %51 : vector<2x4xf32>
    %cst_43 = arith.constant dense<0.000000e+00> : vector<2xf32>
    %59 = vector.multi_reduction <add>, %58, %cst_43 [1] : vector<2x4xf32> to vector<2xf32>
    %60 = vector.shape_cast %59 : vector<2xf32> to vector<2x1xf32>
    %cst_44 = arith.constant dense<0xFF800000> : vector<2xf32>
    %61 = vector.multi_reduction <maximumf>, %57, %cst_44 [1] : vector<2x64xf32> to vector<2xf32>
    %62 = vector.shape_cast %61 : vector<2xf32> to vector<2x1xf32>
    %63 = arith.maximumf %62, %60 : vector<2x1xf32>
    %64 = arith.subf %60, %63 : vector<2x1xf32>
    %65 = math.exp %64 : vector<2x1xf32>
    %66 = vector.broadcast %63 : vector<2x1xf32> to vector<2x64xf32>
    %67 = arith.subf %57, %66 : vector<2x64xf32>
    %68 = math.exp %67 : vector<2x64xf32>
    %cst_45 = arith.constant dense<0.000000e+00> : vector<2xf32>
    %69 = vector.multi_reduction <add>, %68, %cst_45 [1] : vector<2x64xf32> to vector<2xf32>
    %70 = vector.shape_cast %69 : vector<2xf32> to vector<2x1xf32>
    %71 = arith.addf %65, %70 : vector<2x1xf32>
    %72 = tpu.reciprocal %71 {approx = true} : vector<2x1xf32> -> vector<2x1xf32>
    %73 = vector.shape_cast %68 : vector<2x64xf32> to vector<2x1x64xf32>
    "tpu.trace_start"() <{level = 10 : i32, message = "bqk,bkc->bqc"}> : () -> ()
    %cst_46 = arith.constant dense<0.000000e+00> : vector<2x1x4xf32>
    %74 = tpu.matmul %73, %54, %cst_46 {dimension_numbers = #tpu.dot_dimension_numbers<[2], [1], [1], [2], [0, 0, 0, 1, 1, 2], [0], [0]>} : vector<2x1x64xf32>, vector<2x64x4xf32>, vector<2x1x4xf32> -> vector<2x1x4xf32>
    "tpu.trace_stop"() : () -> ()
    %75 = vector.shape_cast %74 : vector<2x1x4xf32> to vector<2x4xf32>
    %76 = vector.broadcast %65 : vector<2x1xf32> to vector<2x4xf32>
    %77 = arith.mulf %76, %52 : vector<2x4xf32>
    %78 = arith.addf %77, %75 : vector<2x4xf32>
    %79 = vector.broadcast %72 : vector<2x1xf32> to vector<2x4xf32>
    %80 = arith.mulf %78, %79 : vector<2x4xf32>
    %c0_47 = arith.constant 0 : index
    %c0_48 = arith.constant 0 : index
    %81 = vector.load %arg8[%c0_47, %c0_48] : memref<8x16xf32, #tpu.memory_space<vmem>>, vector<4x16xf32>
    %cst_49 = arith.constant dense<0.000000e+00> : vector<2x16xf32>
    %82 = tpu.matmul %80, %81, %cst_49 {dimension_numbers = #tpu.dot_dimension_numbers<[1], [0], [0], [1], [0, 0, 1, 1], [], []>} : vector<2x4xf32>, vector<4x16xf32>, vector<2x16xf32> -> vector<2x16xf32>
    %83 = arith.addf %49, %82 : vector<2x16xf32>
    %84 = vector.extract_strided_slice %42 {offsets = [0, 4], sizes = [2, 4], strides = [1, 1]} : vector<2x8xf32> to vector<2x4xf32>
    %85 = vector.extract_strided_slice %46 {offsets = [0, 4], sizes = [2, 4], strides = [1, 1]} : vector<2x8xf32> to vector<2x4xf32>
    %86 = vector.extract_strided_slice %47 {offsets = [0, 4], sizes = [2, 4], strides = [1, 1]} : vector<2x8xf32> to vector<2x4xf32>
    %87 = vector.extract_strided_slice %48 {offsets = [0, 0, 4], sizes = [2, 64, 4], strides = [1, 1, 1]} : vector<2x64x16xf32> to vector<2x64x4xf32>
    %88 = vector.extract_strided_slice %48 {offsets = [0, 0, 12], sizes = [2, 64, 4], strides = [1, 1, 1]} : vector<2x64x16xf32> to vector<2x64x4xf32>
    %89 = vector.shape_cast %84 : vector<2x4xf32> to vector<2x1x4xf32>
    "tpu.trace_start"() <{level = 10 : i32, message = "bqc,bkc->bqk"}> : () -> ()
    %cst_50 = arith.constant dense<0.000000e+00> : vector<2x1x64xf32>
    %90 = tpu.matmul %89, %87, %cst_50 {dimension_numbers = #tpu.dot_dimension_numbers<[2], [2], [1], [1], [0, 0, 0, 1, 1, 1], [0], [0]>} : vector<2x1x4xf32>, vector<2x64x4xf32>, vector<2x1x64xf32> -> vector<2x1x64xf32>
    "tpu.trace_stop"() : () -> ()
    %91 = vector.shape_cast %90 : vector<2x1x64xf32> to vector<2x64xf32>
    %92 = arith.mulf %84, %85 : vector<2x4xf32>
    %cst_51 = arith.constant dense<0.000000e+00> : vector<2xf32>
    %93 = vector.multi_reduction <add>, %92, %cst_51 [1] : vector<2x4xf32> to vector<2xf32>
    %94 = vector.shape_cast %93 : vector<2xf32> to vector<2x1xf32>
    %cst_52 = arith.constant dense<0xFF800000> : vector<2xf32>
    %95 = vector.multi_reduction <maximumf>, %91, %cst_52 [1] : vector<2x64xf32> to vector<2xf32>
    %96 = vector.shape_cast %95 : vector<2xf32> to vector<2x1xf32>
    %97 = arith.maximumf %96, %94 : vector<2x1xf32>
    %98 = arith.subf %94, %97 : vector<2x1xf32>
    %99 = math.exp %98 : vector<2x1xf32>
    %100 = vector.broadcast %97 : vector<2x1xf32> to vector<2x64xf32>
    %101 = arith.subf %91, %100 : vector<2x64xf32>
    %102 = math.exp %101 : vector<2x64xf32>
    %cst_53 = arith.constant dense<0.000000e+00> : vector<2xf32>
    %103 = vector.multi_reduction <add>, %102, %cst_53 [1] : vector<2x64xf32> to vector<2xf32>
    %104 = vector.shape_cast %103 : vector<2xf32> to vector<2x1xf32>
    %105 = arith.addf %99, %104 : vector<2x1xf32>
    %106 = tpu.reciprocal %105 {approx = true} : vector<2x1xf32> -> vector<2x1xf32>
    %107 = vector.shape_cast %102 : vector<2x64xf32> to vector<2x1x64xf32>
    "tpu.trace_start"() <{level = 10 : i32, message = "bqk,bkc->bqc"}> : () -> ()
    %cst_54 = arith.constant dense<0.000000e+00> : vector<2x1x4xf32>
    %108 = tpu.matmul %107, %88, %cst_54 {dimension_numbers = #tpu.dot_dimension_numbers<[2], [1], [1], [2], [0, 0, 0, 1, 1, 2], [0], [0]>} : vector<2x1x64xf32>, vector<2x64x4xf32>, vector<2x1x4xf32> -> vector<2x1x4xf32>
    "tpu.trace_stop"() : () -> ()
    %109 = vector.shape_cast %108 : vector<2x1x4xf32> to vector<2x4xf32>
    %110 = vector.broadcast %99 : vector<2x1xf32> to vector<2x4xf32>
    %111 = arith.mulf %110, %86 : vector<2x4xf32>
    %112 = arith.addf %111, %109 : vector<2x4xf32>
    %113 = vector.broadcast %106 : vector<2x1xf32> to vector<2x4xf32>
    %114 = arith.mulf %112, %113 : vector<2x4xf32>
    %c4 = arith.constant 4 : index
    %c0_55 = arith.constant 0 : index
    %115 = vector.load %arg8[%c4, %c0_55] : memref<8x16xf32, #tpu.memory_space<vmem>>, vector<4x16xf32>
    %cst_56 = arith.constant dense<0.000000e+00> : vector<2x16xf32>
    %116 = tpu.matmul %114, %115, %cst_56 {dimension_numbers = #tpu.dot_dimension_numbers<[1], [0], [0], [1], [0, 0, 1, 1], [], []>} : vector<2x4xf32>, vector<4x16xf32>, vector<2x16xf32> -> vector<2x16xf32>
    %117 = arith.addf %83, %116 : vector<2x16xf32>
    %c0_57 = arith.constant 0 : index
    %c0_58 = arith.constant 0 : index
    %118 = vector.load %arg9[%c0_57, %c0_58] : memref<1x16xf32, #tpu.memory_space<vmem>>, vector<1x16xf32>
    %119 = vector.broadcast %118 : vector<1x16xf32> to vector<2x16xf32>
    %120 = arith.addf %117, %119 : vector<2x16xf32>
    %c0_59 = arith.constant 0 : index
    %c0_60 = arith.constant 0 : index
    %121 = vector.load %arg10[%c0_59, %c0_60] : memref<2x16xf32, #tpu.memory_space<vmem>>, vector<2x16xf32>
    tpu.vector_store %arg10[%c0_59, %c0_60], %120 {strides = array<i32>} : memref<2x16xf32, #tpu.memory_space<vmem>>, vector<2x16xf32>,
    return
  }
  func.func @transform_0(%arg0: i32) -> (i32, i32, i32) {
    %c0_i32 = arith.constant 0 : i32
    %c0_i32_0 = arith.constant 0 : i32
    %c0_i32_1 = arith.constant 0 : i32
    return %arg0, %c0_i32, %c0_i32_0 : i32, i32, i32
  }
  func.func @transform_1(%arg0: i32) -> (i32, i32) {
    %c0_i32 = arith.constant 0 : i32
    %c0_i32_0 = arith.constant 0 : i32
    %c0_i32_1 = arith.constant 0 : i32
    return %c0_i32, %c0_i32_0 : i32, i32
  }
  func.func @transform_2(%arg0: i32) -> (i32, i32) {
    %c0_i32 = arith.constant 0 : i32
    %c0_i32_0 = arith.constant 0 : i32
    %c0_i32_1 = arith.constant 0 : i32
    return %c0_i32, %c0_i32_0 : i32, i32
  }
  func.func @transform_3(%arg0: i32) -> (i32, i32) {
    %c0_i32 = arith.constant 0 : i32
    %c0_i32_0 = arith.constant 0 : i32
    %c0_i32_1 = arith.constant 0 : i32
    return %c0_i32, %c0_i32_0 : i32, i32
  }
  func.func @transform_4(%arg0: i32) -> (i32, i32) {
    %c0_i32 = arith.constant 0 : i32
    %c0_i32_0 = arith.constant 0 : i32
    %c0_i32_1 = arith.constant 0 : i32
    return %c0_i32, %c0_i32_0 : i32, i32
  }
  func.func @transform_5(%arg0: i32) -> (i32, i32) {
    %c0_i32 = arith.constant 0 : i32
    %c0_i32_0 = arith.constant 0 : i32
    %c0_i32_1 = arith.constant 0 : i32
    return %c0_i32, %c0_i32_0 : i32, i32
  }
  func.func @transform_6(%arg0: i32) -> (i32, i32) {
    %c0_i32 = arith.constant 0 : i32
    %c0_i32_0 = arith.constant 0 : i32
    %c0_i32_1 = arith.constant 0 : i32
    return %c0_i32, %c0_i32_0 : i32, i32
  }
  func.func @transform_7(%arg0: i32) -> (i32, i32) {
    %c0_i32 = arith.constant 0 : i32
    %c0_i32_0 = arith.constant 0 : i32
    %c0_i32_1 = arith.constant 0 : i32
    return %c0_i32, %c0_i32_0 : i32, i32
  }
  func.func @transform_8(%arg0: i32) -> (i32, i32) {
    %c0_i32 = arith.constant 0 : i32
    %c0_i32_0 = arith.constant 0 : i32
    %c0_i32_1 = arith.constant 0 : i32
    return %c0_i32, %c0_i32_0 : i32, i32
  }
  func.func @transform_9(%arg0: i32) -> (i32, i32) {
    %c0_i32 = arith.constant 0 : i32
    %c0_i32_0 = arith.constant 0 : i32
    return %arg0, %c0_i32 : i32, i32
  }
}

</mosaic_0001>

<llo_original>
// kernel: tpu_custom_call.1
$region0: #{tpu_custom_call.1}
  #allocation0 [shape = 'u32[]', space=smem, size = 0x4, offset = 0x4, fixed_abs, tag = 'smem constant byte address 0x4 - core index']
  #allocation1 [shape = 'u32[144,128]{1,0:T(1,128)}', space=vmem, size = 0x12000, scoped, tag = 'internal scratch']
  #allocation2 [shape = 'f32[2,8]{1,0:T(2,128)}', space=vmem, size = 0x400, scoped, tag = 'scratch operand']
  #allocation3 [shape = 'f32[2,64,16]{2,1,0:T(8,128)}', space=vmem, size = 0x10000, scoped, tag = 'scratch operand']
  %s0 = inlined_call_operand.vmem [shape: f32[2,64,8], index: 0, kind: input, shape index: {}]
  %s1 = inlined_call_operand.vmem [shape: f32[1,8], index: 1, kind: input, shape index: {}]
  %s2 = inlined_call_operand.vmem [shape: f32[64,8], index: 2, kind: input, shape index: {}]
  %s3 = inlined_call_operand.vmem [shape: f32[8,8], index: 3, kind: input, shape index: {}]
  %s4 = inlined_call_operand.vmem [shape: f32[1,8], index: 4, kind: input, shape index: {}]
  %s5 = inlined_call_operand.vmem [shape: f32[8,16], index: 5, kind: input, shape index: {}]
  %s6 = inlined_call_operand.vmem [shape: f32[1,16], index: 6, kind: input, shape index: {}]
  %s7 = inlined_call_operand.vmem [shape: f32[8,16], index: 7, kind: input, shape index: {}]
  %s8 = inlined_call_operand.vmem [shape: f32[1,16], index: 8, kind: input, shape index: {}]
  %s9 = inlined_call_operand.hbm [shape: f32[2,16], index: 9, kind: output, shape index: {}]
  %s10 = sld [smem:[#allocation0]]
  $region46: #{tpu_custom_call.1} parent=0
    _
  %s12 = ssub.s32 1, %s10
  %s13 = scalar_select 0, %s12, %s10
  $region1: #{tpu_custom_call.1} parent=0
    #allocation4 [shape = 'u8[1024]{0}', space=vmem, size = 0x400, scoped, tag = 'output window, operand 0, single buffered']
    #allocation5 [shape = 's32[1]{0}', space=sflag, size = 0x4, scoped, tag = 'scoped memory for tpu_custom_call.1']
    %14 = vsyncpa [#allocation5], 0
    // Predicated region
    $region2: #{tpu_custom_call.1} parent=1 // pred_check
      _
    $region3: #{tpu_custom_call.1} parent=1 // pred_check_branch
      %16 = sbr.rel (0) target = $region5
    $region4: #{tpu_custom_call.1} parent=1 // pred_region
      _
    $region5: #{tpu_custom_call.1} parent=1 // pred_fallthru
      _
    // Predicated region
    $region6: #{tpu_custom_call.1} parent=1 // pred_check
      _
    $region7: #{tpu_custom_call.1} parent=1 // pred_check_branch
      %18 = sbr.rel (0) target = $region9
    $region8: #{tpu_custom_call.1} parent=1 // pred_region
      _
    $region9: #{tpu_custom_call.1} parent=1 // pred_fallthru
      _
    // Predicated region
    $region10: #{tpu_custom_call.1} parent=1 // pred_check
      _
    $region11: #{tpu_custom_call.1} parent=1 // pred_check_branch
      %20 = sbr.rel (0) target = $region13
    $region12: #{tpu_custom_call.1} parent=1 // pred_region
      _
    $region13: #{tpu_custom_call.1} parent=1 // pred_fallthru
      _
    // Predicated region
    $region14: #{tpu_custom_call.1} parent=1 // pred_check
      _
    $region15: #{tpu_custom_call.1} parent=1 // pred_check_branch
      %22 = sbr.rel (0) target = $region17
    $region16: #{tpu_custom_call.1} parent=1 // pred_region
      _
    $region17: #{tpu_custom_call.1} parent=1 // pred_fallthru
      _
    // Predicated region
    $region18: #{tpu_custom_call.1} parent=1 // pred_check
      _
    $region19: #{tpu_custom_call.1} parent=1 // pred_check_branch
      %24 = sbr.rel (0) target = $region21
    $region20: #{tpu_custom_call.1} parent=1 // pred_region
      _
    $region21: #{tpu_custom_call.1} parent=1 // pred_fallthru
      _
    // Predicated region
    $region22: #{tpu_custom_call.1} parent=1 // pred_check
      _
    $region23: #{tpu_custom_call.1} parent=1 // pred_check_branch
      %26 = sbr.rel (0) target = $region25
    $region24: #{tpu_custom_call.1} parent=1 // pred_region
      _
    $region25: #{tpu_custom_call.1} parent=1 // pred_fallthru
      _
    // Predicated region
    $region26: #{tpu_custom_call.1} parent=1 // pred_check
      _
    $region27: #{tpu_custom_call.1} parent=1 // pred_check_branch
      %28 = sbr.rel (0) target = $region29
    $region28: #{tpu_custom_call.1} parent=1 // pred_region
      _
    $region29: #{tpu_custom_call.1} parent=1 // pred_fallthru
      _
    // Predicated region
    $region30: #{tpu_custom_call.1} parent=1 // pred_check
      _
    $region31: #{tpu_custom_call.1} parent=1 // pred_check_branch
      %30 = sbr.rel (0) target = $region33
    $region32: #{tpu_custom_call.1} parent=1 // pred_region
      _
    $region33: #{tpu_custom_call.1} parent=1 // pred_fallthru
      _
    // Predicated region
    $region34: #{tpu_custom_call.1} parent=1 // pred_check
      _
    $region35: #{tpu_custom_call.1} parent=1 // pred_check_branch
      %32 = sbr.rel (0) target = $region37
    $region36: #{tpu_custom_call.1} parent=1 // pred_region
      _
    $region37: #{tpu_custom_call.1} parent=1 // pred_fallthru
      _
    %v33 = vld [vmem:[%s2] sm:$0xff]
    %v34 = vld [vmem:[%s2 + $0x8] sm:$0xff]
    %v35 = vld [vmem:[%s2 + $0x10] sm:$0xff]
    %v36 = vld [vmem:[%s2 + $0x18] sm:$0xff]
    %v37 = vld [vmem:[%s2 + $0x20] sm:$0xff]
    %v38 = vld [vmem:[%s2 + $0x28] sm:$0xff]
    %v39 = vld [vmem:[%s2 + $0x30] sm:$0xff]
    %v40 = vld [vmem:[%s2 + $0x38] sm:$0xff]
    %v41 = vld [vmem:[%s5] sm:$0xff]
    %v42 = vld [vmem:[%s6] sm:$0x1]
    %v43 = vld [vmem:[%s0] sm:$0xff]
    %v44 = vld [vmem:[%s0 + $0x8] sm:$0xff]
    %v45 = vld [vmem:[%s0 + $0x10] sm:$0xff]
    %v46 = vld [vmem:[%s0 + $0x18] sm:$0xff]
    %v47 = vld [vmem:[%s0 + $0x20] sm:$0xff]
    %v48 = vld [vmem:[%s0 + $0x28] sm:$0xff]
    %v49 = vld [vmem:[%s0 + $0x30] sm:$0xff]
    %v50 = vld [vmem:[%s0 + $0x38] sm:$0xff]
    %vm51 = vcmask 64512
    %v52 = vsel %vm51, %v43, 0.0
    %v53 = vsel %vm51, %v44, 0.0
    %v54 = vadd.f32 %v52, %v53
    %v55 = vsel %vm51, %v45, 0.0
    %v56 = vadd.f32 %v54, %v55
    %v57 = vsel %vm51, %v46, 0.0
    %v58 = vadd.f32 %v56, %v57
    %v59 = vsel %vm51, %v47, 0.0
    %v60 = vadd.f32 %v58, %v59
    %v61 = vsel %vm51, %v48, 0.0
    %v62 = vadd.f32 %v60, %v61
    %v63 = vsel %vm51, %v49, 0.0
    %v64 = vadd.f32 %v62, %v63
    %v65 = vsel %vm51, %v50, 0.0
    %v66 = vadd.f32 %v64, %v65
    %v67 = vrot.slane %v66, 4
    %v68 = vadd.f32 %v66, %v67
    %v69 = vrot.slane %v68, 2
    %v70 = vadd.f32 %v68, %v69
    %v71 = vrot.slane %v70, 1
    %v72 = vadd.f32 %v70, %v71
    %v73 = vrcp.pop 64.0
    %v74 = vmul.f32 %v72, %v73
    %v75 = vld [vmem:[%s1] sm:$0x1]
    %v76 = vadd.f32 %v74, %v75
    %vm77 = vcmask 57344
    %78 = vst.msk [vmem:[#allocation2] sm:$0x1] %vm77, %v76
    %v79 = vadd.f32 %v43, %v33
    %v80 = vadd.f32 %v44, %v34
    %v81 = vadd.f32 %v45, %v35
    %v82 = vadd.f32 %v46, %v36
    %v83 = vadd.f32 %v47, %v37
    %v84 = vadd.f32 %v48, %v38
    %v85 = vadd.f32 %v49, %v39
    %v86 = vadd.f32 %v50, %v40
    %v88 = vlaneseq
    %v89 = vshrl.u32 %v88, 7
    %v90 = vsub.s32 0, %v89
    %v91 = vrot.slane %v42, %v90
    %v94 = vsel %vm51, %v79, 0
    %v97 = vsel %vm51, %v80, 0
    %v100 = vsel %vm51, %v81, 0
    %v103 = vsel %vm51, %v82, 0
    %v106 = vsel %vm51, %v83, 0
    %v109 = vsel %vm51, %v84, 0
    %v112 = vsel %vm51, %v85, 0
    %v115 = vsel %vm51, %v86, 0
    %117 = vmatprep.subr.mxu0 0.0
    %118 = vmatpush1.msra.mxu0 0.0
    %119 = vmatprep.subr.mxu0 0.0
    %120 = vmatpush1.msra.mxu0 0.0
    %121 = vmatprep.subr.mxu0 0.0
    %122 = vmatpush1.msra.mxu0 0.0
    %123 = vmatprep.subr.mxu0 0.0
    %124 = vmatpush1.msra.mxu0 0.0
    %125 = vmatprep.subr.mxu0 0.0
    %126 = vmatpush1.msra.mxu0 0.0
    %127 = vmatprep.subr.mxu0 0.0
    %128 = vmatpush1.msra.mxu0 0.0
    %129 = vmatprep.subr.mxu0 0.0
    %130 = vmatpush1.msra.mxu0 0.0
    %131 = vmatprep.subr.mxu0 0.0
    %132 = vmatpush1.msra.mxu0 0.0
    %133 = vmatprep.subr.mxu0 0.0
    %134 = vmatpush1.msra.mxu0 0.0
    %135 = vmatprep.subr.mxu0 0.0
    %136 = vmatpush1.msra.mxu0 0.0
    %137 = vmatprep.subr.mxu0 0.0
    %138 = vmatpush1.msra.mxu0 0.0
    %139 = vmatprep.subr.mxu0 0.0
    %140 = vmatpush1.msra.mxu0 0.0
    %141 = vmatprep.subr.mxu0 0.0
    %142 = vmatpush1.msra.mxu0 0.0
    %143 = vmatprep.subr.mxu0 0.0
    %144 = vmatpush1.msra.mxu0 0.0
    %145 = vmatprep.subr.mxu0 0.0
    %146 = vmatpush1.msra.mxu0 0.0
    %147 = vmatprep.subr.mxu0 0.0
    %148 = vmatpush1.msra.mxu0 %v41
    %149 = vmatprep.subr.mxu0 0.0
    %150 = vmatpush2.msra.mxu0 0.0
    %151 = vmatprep.subr.mxu0 0.0
    %152 = vmatpush2.msra.mxu0 0.0
    %153 = vmatprep.subr.mxu0 0.0
    %154 = vmatpush2.msra.mxu0 0.0
    %155 = vmatprep.subr.mxu0 0.0
    %156 = vmatpush2.msra.mxu0 0.0
    %157 = vmatprep.subr.mxu0 0.0
    %158 = vmatpush2.msra.mxu0 0.0
    %159 = vmatprep.subr.mxu0 0.0
    %160 = vmatpush2.msra.mxu0 0.0
    %161 = vmatprep.subr.mxu0 0.0
    %162 = vmatpush2.msra.mxu0 0.0
    %163 = vmatprep.subr.mxu0 0.0
    %164 = vmatpush2.msra.mxu0 0.0
    %165 = vmatprep.subr.mxu0 0.0
    %166 = vmatpush2.msra.mxu0 0.0
    %167 = vmatprep.subr.mxu0 0.0
    %168 = vmatpush2.msra.mxu0 0.0
    %169 = vmatprep.subr.mxu0 0.0
    %170 = vmatpush2.msra.mxu0 0.0
    %171 = vmatprep.subr.mxu0 0.0
    %172 = vmatpush2.msra.mxu0 0.0
    %173 = vmatprep.subr.mxu0 0.0
    %174 = vmatpush2.msra.mxu0 0.0
    %175 = vmatprep.subr.mxu0 0.0
    %176 = vmatpush2.msra.mxu0 0.0
    %177 = vmatprep.subr.mxu0 0.0
    %178 = vmatpush2.msra.mxu0 0.0
    %179 = vmatprep.subr.mxu0 0.0
    %180 = vmatpush2.msra.mxu0 0.0
    %181 = vmatprep.mubr.f32.mxu0 0.0
    %182 = vmatmul.mubr.f32.gmra.mxu0 %v94
    %v183 = vpop.f32.mrf.mxu0
    %v184 = vadd.f32 %v91, %v183
    %v185 = vpop.f32.mrf.mxu0
    %186 = vmatprep.mubr.f32.mxu0 0.0
    %187 = vmatmul.mubr.f32.gmra.mxu0 %v97
    %v188 = vpop.f32.mrf.mxu0
    %v189 = vadd.f32 %v91, %v188
    %v190 = vpop.f32.mrf.mxu0
    %191 = vmatprep.mubr.f32.mxu0 0.0
    %192 = vmatmul.mubr.f32.gmra.mxu0 %v100
    %v193 = vpop.f32.mrf.mxu0
    %v194 = vadd.f32 %v91, %v193
    %v195 = vpop.f32.mrf.mxu0
    %196 = vmatprep.mubr.f32.mxu0 0.0
    %197 = vmatmul.mubr.f32.gmra.mxu0 %v103
    %v198 = vpop.f32.mrf.mxu0
    %v199 = vadd.f32 %v91, %v198
    %v200 = vpop.f32.mrf.mxu0
    %201 = vmatprep.mubr.f32.mxu0 0.0
    %202 = vmatmul.mubr.f32.gmra.mxu0 %v106
    %v203 = vpop.f32.mrf.mxu0
    %v204 = vadd.f32 %v91, %v203
    %v205 = vpop.f32.mrf.mxu0
    %206 = vmatprep.mubr.f32.mxu0 0.0
    %207 = vmatmul.mubr.f32.gmra.mxu0 %v109
    %v208 = vpop.f32.mrf.mxu0
    %v209 = vadd.f32 %v91, %v208
    %v210 = vpop.f32.mrf.mxu0
    %211 = vmatprep.mubr.f32.mxu0 0.0
    %212 = vmatmul.mubr.f32.gmra.mxu0 %v112
    %v213 = vpop.f32.mrf.mxu0
    %v214 = vadd.f32 %v91, %v213
    %v215 = vpop.f32.mrf.mxu0
    %216 = vmatprep.mubr.f32.mxu0 0.0
    %217 = vmatmul.mubr.f32.gmra.mxu0 %v115
    %v218 = vpop.f32.mrf.mxu0
    %v219 = vadd.f32 %v91, %v218
    %v220 = vpop.f32.mrf.mxu0
    %221 = vdwg.mxu0
    %vm222 = vcmask 130048
    %223 = vst.msk [vmem:[#allocation3] sm:$0xff] %vm222, %v184
    %224 = vst.msk [vmem:[#allocation3 + $0x8] sm:$0xff] %vm222, %v189
    %225 = vst.msk [vmem:[#allocation3 + $0x10] sm:$0xff] %vm222, %v194
    %226 = vst.msk [vmem:[#allocation3 + $0x18] sm:$0xff] %vm222, %v199
    %227 = vst.msk [vmem:[#allocation3 + $0x20] sm:$0xff] %vm222, %v204
    %228 = vst.msk [vmem:[#allocation3 + $0x28] sm:$0xff] %vm222, %v209
    %229 = vst.msk [vmem:[#allocation3 + $0x30] sm:$0xff] %vm222, %v214
    %230 = vst.msk [vmem:[#allocation3 + $0x38] sm:$0xff] %vm222, %v219
    %s231 = scalar_lea.vmem %s0, 64
    %v232 = vld [vmem:[%s231] sm:$0xff]
    %v233 = vld [vmem:[%s231 + $0x8] sm:$0xff]
    %v234 = vld [vmem:[%s231 + $0x10] sm:$0xff]
    %v235 = vld [vmem:[%s231 + $0x18] sm:$0xff]
    %v236 = vld [vmem:[%s231 + $0x20] sm:$0xff]
    %v237 = vld [vmem:[%s231 + $0x28] sm:$0xff]
    %v238 = vld [vmem:[%s231 + $0x30] sm:$0xff]
    %v239 = vld [vmem:[%s231 + $0x38] sm:$0xff]
    %v240 = vsel %vm51, %v232, 0.0
    %v241 = vsel %vm51, %v233, 0.0
    %v242 = vadd.f32 %v240, %v241
    %v243 = vsel %vm51, %v234, 0.0
    %v244 = vadd.f32 %v242, %v243
    %v245 = vsel %vm51, %v235, 0.0
    %v246 = vadd.f32 %v244, %v245
    %v247 = vsel %vm51, %v236, 0.0
    %v248 = vadd.f32 %v246, %v247
    %v249 = vsel %vm51, %v237, 0.0
    %v250 = vadd.f32 %v248, %v249
    %v251 = vsel %vm51, %v238, 0.0
    %v252 = vadd.f32 %v250, %v251
    %v253 = vsel %vm51, %v239, 0.0
    %v254 = vadd.f32 %v252, %v253
    %v255 = vrot.slane %v254, 4
    %v256 = vadd.f32 %v254, %v255
    %v257 = vrot.slane %v256, 2
    %v258 = vadd.f32 %v256, %v257
    %v259 = vrot.slane %v258, 1
    %v260 = vadd.f32 %v258, %v259
    %v261 = vmul.f32 %v260, %v73
    %v262 = vld [vmem:[%s1] sm:$0x1]
    %v263 = vadd.f32 %v261, %v262
    %264 = vst.msk [vmem:[#allocation2 + $0x1] sm:$0x1] %vm77, %v263
    %v265 = vadd.f32 %v232, %v33
    %v266 = vadd.f32 %v233, %v34
    %v267 = vadd.f32 %v234, %v35
    %v268 = vadd.f32 %v235, %v36
    %v269 = vadd.f32 %v236, %v37
    %v270 = vadd.f32 %v237, %v38
    %v271 = vadd.f32 %v238, %v39
    %v272 = vadd.f32 %v239, %v40
    %v274 = vsel %vm51, %v265, 0
    %v277 = vsel %vm51, %v266, 0
    %v280 = vsel %vm51, %v267, 0
    %v283 = vsel %vm51, %v268, 0
    %v286 = vsel %vm51, %v269, 0
    %v289 = vsel %vm51, %v270, 0
    %v292 = vsel %vm51, %v271, 0
    %v295 = vsel %vm51, %v272, 0
    %297 = vmatprep.subr.mxu0 0.0
    %298 = vmatpush1.msra.mxu0 0.0
    %299 = vmatprep.subr.mxu0 0.0
    %300 = vmatpush1.msra.mxu0 0.0
    %301 = vmatprep.subr.mxu0 0.0
    %302 = vmatpush1.msra.mxu0 0.0
    %303 = vmatprep.subr.mxu0 0.0
    %304 = vmatpush1.msra.mxu0 0.0
    %305 = vmatprep.subr.mxu0 0.0
    %306 = vmatpush1.msra.mxu0 0.0
    %307 = vmatprep.subr.mxu0 0.0
    %308 = vmatpush1.msra.mxu0 0.0
    %309 = vmatprep.subr.mxu0 0.0
    %310 = vmatpush1.msra.mxu0 0.0
    %311 = vmatprep.subr.mxu0 0.0
    %312 = vmatpush1.msra.mxu0 0.0
    %313 = vmatprep.subr.mxu0 0.0
    %314 = vmatpush1.msra.mxu0 0.0
    %315 = vmatprep.subr.mxu0 0.0
    %316 = vmatpush1.msra.mxu0 0.0
    %317 = vmatprep.subr.mxu0 0.0
    %318 = vmatpush1.msra.mxu0 0.0
    %319 = vmatprep.subr.mxu0 0.0
    %320 = vmatpush1.msra.mxu0 0.0
    %321 = vmatprep.subr.mxu0 0.0
    %322 = vmatpush1.msra.mxu0 0.0
    %323 = vmatprep.subr.mxu0 0.0
    %324 = vmatpush1.msra.mxu0 0.0
    %325 = vmatprep.subr.mxu0 0.0
    %326 = vmatpush1.msra.mxu0 0.0
    %327 = vmatprep.subr.mxu0 0.0
    %328 = vmatpush1.msra.mxu0 %v41
    %329 = vmatprep.subr.mxu0 0.0
    %330 = vmatpush2.msra.mxu0 0.0
    %331 = vmatprep.subr.mxu0 0.0
    %332 = vmatpush2.msra.mxu0 0.0
    %333 = vmatprep.subr.mxu0 0.0
    %334 = vmatpush2.msra.mxu0 0.0
    %335 = vmatprep.subr.mxu0 0.0
    %336 = vmatpush2.msra.mxu0 0.0
    %337 = vmatprep.subr.mxu0 0.0
    %338 = vmatpush2.msra.mxu0 0.0
    %339 = vmatprep.subr.mxu0 0.0
    %340 = vmatpush2.msra.mxu0 0.0
    %341 = vmatprep.subr.mxu0 0.0
    %342 = vmatpush2.msra.mxu0 0.0
    %343 = vmatprep.subr.mxu0 0.0
    %344 = vmatpush2.msra.mxu0 0.0
    %345 = vmatprep.subr.mxu0 0.0
    %346 = vmatpush2.msra.mxu0 0.0
    %347 = vmatprep.subr.mxu0 0.0
    %348 = vmatpush2.msra.mxu0 0.0
    %349 = vmatprep.subr.mxu0 0.0
    %350 = vmatpush2.msra.mxu0 0.0
    %351 = vmatprep.subr.mxu0 0.0
    %352 = vmatpush2.msra.mxu0 0.0
    %353 = vmatprep.subr.mxu0 0.0
    %354 = vmatpush2.msra.mxu0 0.0
    %355 = vmatprep.subr.mxu0 0.0
    %356 = vmatpush2.msra.mxu0 0.0
    %357 = vmatprep.subr.mxu0 0.0
    %358 = vmatpush2.msra.mxu0 0.0
    %359 = vmatprep.subr.mxu0 0.0
    %360 = vmatpush2.msra.mxu0 0.0
    %361 = vmatprep.mubr.f32.mxu0 0.0
    %362 = vmatmul.mubr.f32.gmra.mxu0 %v274
    %v363 = vpop.f32.mrf.mxu0
    %v364 = vadd.f32 %v91, %v363
    %v365 = vpop.f32.mrf.mxu0
    %366 = vmatprep.mubr.f32.mxu0 0.0
    %367 = vmatmul.mubr.f32.gmra.mxu0 %v277
    %v368 = vpop.f32.mrf.mxu0
    %v369 = vadd.f32 %v91, %v368
    %v370 = vpop.f32.mrf.mxu0
    %371 = vmatprep.mubr.f32.mxu0 0.0
    %372 = vmatmul.mubr.f32.gmra.mxu0 %v280
    %v373 = vpop.f32.mrf.mxu0
    %v374 = vadd.f32 %v91, %v373
    %v375 = vpop.f32.mrf.mxu0
    %376 = vmatprep.mubr.f32.mxu0 0.0
    %377 = vmatmul.mubr.f32.gmra.mxu0 %v283
    %v378 = vpop.f32.mrf.mxu0
    %v379 = vadd.f32 %v91, %v378
    %v380 = vpop.f32.mrf.mxu0
    %381 = vmatprep.mubr.f32.mxu0 0.0
    %382 = vmatmul.mubr.f32.gmra.mxu0 %v286
    %v383 = vpop.f32.mrf.mxu0
    %v384 = vadd.f32 %v91, %v383
    %v385 = vpop.f32.mrf.mxu0
    %386 = vmatprep.mubr.f32.mxu0 0.0
    %387 = vmatmul.mubr.f32.gmra.mxu0 %v289
    %v388 = vpop.f32.mrf.mxu0
    %v389 = vadd.f32 %v91, %v388
    %v390 = vpop.f32.mrf.mxu0
    %391 = vmatprep.mubr.f32.mxu0 0.0
    %392 = vmatmul.mubr.f32.gmra.mxu0 %v292
    %v393 = vpop.f32.mrf.mxu0
    %v394 = vadd.f32 %v91, %v393
    %v395 = vpop.f32.mrf.mxu0
    %396 = vmatprep.mubr.f32.mxu0 0.0
    %397 = vmatmul.mubr.f32.gmra.mxu0 %v295
    %v398 = vpop.f32.mrf.mxu0
    %v399 = vadd.f32 %v91, %v398
    %v400 = vpop.f32.mrf.mxu0
    %401 = vdwg.mxu0
    %s402 = scalar_lea.vmem [#allocation3], 64
    %403 = vst.msk [vmem:[%s402] sm:$0xff] %vm222, %v364
    %404 = vst.msk [vmem:[%s402 + $0x8] sm:$0xff] %vm222, %v369
    %405 = vst.msk [vmem:[%s402 + $0x10] sm:$0xff] %vm222, %v374
    %406 = vst.msk [vmem:[%s402 + $0x18] sm:$0xff] %vm222, %v379
    %407 = vst.msk [vmem:[%s402 + $0x20] sm:$0xff] %vm222, %v384
    %408 = vst.msk [vmem:[%s402 + $0x28] sm:$0xff] %vm222, %v389
    %409 = vst.msk [vmem:[%s402 + $0x30] sm:$0xff] %vm222, %v394
    %410 = vst.msk [vmem:[%s402 + $0x38] sm:$0xff] %vm222, %v399
    %v411 = vld [vmem:[#allocation2] sm:$0x3]
    %v412 = vld [vmem:[%s3] sm:$0xff]
    %v413 = vld [vmem:[%s4] sm:$0x1]
    %v415 = vlaneseq
    %v416 = vshrl.u32 %v415, 7
    %v417 = vsub.s32 0, %v416
    %v418 = vrot.slane %v413, %v417
    %v421 = vsel %vm51, %v411, 0
    %423 = vmatprep.subr.mxu0 0.0
    %424 = vmatpush1.msra.mxu0 0.0
    %425 = vmatprep.subr.mxu0 0.0
    %426 = vmatpush1.msra.mxu0 0.0
    %427 = vmatprep.subr.mxu0 0.0
    %428 = vmatpush1.msra.mxu0 0.0
    %429 = vmatprep.subr.mxu0 0.0
    %430 = vmatpush1.msra.mxu0 0.0
    %431 = vmatprep.subr.mxu0 0.0
    %432 = vmatpush1.msra.mxu0 0.0
    %433 = vmatprep.subr.mxu0 0.0
    %434 = vmatpush1.msra.mxu0 0.0
    %435 = vmatprep.subr.mxu0 0.0
    %436 = vmatpush1.msra.mxu0 0.0
    %437 = vmatprep.subr.mxu0 0.0
    %438 = vmatpush1.msra.mxu0 0.0
    %439 = vmatprep.subr.mxu0 0.0
    %440 = vmatpush1.msra.mxu0 0.0
    %441 = vmatprep.subr.mxu0 0.0
    %442 = vmatpush1.msra.mxu0 0.0
    %443 = vmatprep.subr.mxu0 0.0
    %444 = vmatpush1.msra.mxu0 0.0
    %445 = vmatprep.subr.mxu0 0.0
    %446 = vmatpush1.msra.mxu0 0.0
    %447 = vmatprep.subr.mxu0 0.0
    %448 = vmatpush1.msra.mxu0 0.0
    %449 = vmatprep.subr.mxu0 0.0
    %450 = vmatpush1.msra.mxu0 0.0
    %451 = vmatprep.subr.mxu0 0.0
    %452 = vmatpush1.msra.mxu0 0.0
    %453 = vmatprep.subr.mxu0 0.0
    %454 = vmatpush1.msra.mxu0 %v412
    %455 = vmatprep.subr.mxu0 0.0
    %456 = vmatpush2.msra.mxu0 0.0
    %457 = vmatprep.subr.mxu0 0.0
    %458 = vmatpush2.msra.mxu0 0.0
    %459 = vmatprep.subr.mxu0 0.0
    %460 = vmatpush2.msra.mxu0 0.0
    %461 = vmatprep.subr.mxu0 0.0
    %462 = vmatpush2.msra.mxu0 0.0
    %463 = vmatprep.subr.mxu0 0.0
    %464 = vmatpush2.msra.mxu0 0.0
    %465 = vmatprep.subr.mxu0 0.0
    %466 = vmatpush2.msra.mxu0 0.0
    %467 = vmatprep.subr.mxu0 0.0
    %468 = vmatpush2.msra.mxu0 0.0
    %469 = vmatprep.subr.mxu0 0.0
    %470 = vmatpush2.msra.mxu0 0.0
    %471 = vmatprep.subr.mxu0 0.0
    %472 = vmatpush2.msra.mxu0 0.0
    %473 = vmatprep.subr.mxu0 0.0
    %474 = vmatpush2.msra.mxu0 0.0
    %475 = vmatprep.subr.mxu0 0.0
    %476 = vmatpush2.msra.mxu0 0.0
    %477 = vmatprep.subr.mxu0 0.0
    %478 = vmatpush2.msra.mxu0 0.0
    %479 = vmatprep.subr.mxu0 0.0
    %480 = vmatpush2.msra.mxu0 0.0
    %481 = vmatprep.subr.mxu0 0.0
    %482 = vmatpush2.msra.mxu0 0.0
    %483 = vmatprep.subr.mxu0 0.0
    %484 = vmatpush2.msra.mxu0 0.0
    %485 = vmatprep.subr.mxu0 0.0
    %486 = vmatpush2.msra.mxu0 0.0
    %487 = vmatprep.mubr.f32.mxu0 0.0
    %488 = vmatmul.mubr.f32.gmra.mxu0 %v421
    %v489 = vpop.f32.mrf.mxu0
    %v490 = vadd.f32 %v418, %v489
    %v491 = vpop.f32.mrf.mxu0
    %492 = vdwg.mxu0
    %v493 = vmul.f32 %v490, 0.5
    %494 = vmatprep.subr.mxu0 0.0
    %495 = vmatpush1.msra.mxu0 0.0
    %496 = vmatprep.subr.mxu0 0.0
    %497 = vmatpush1.msra.mxu0 0.0
    %498 = vmatprep.subr.mxu0 0.0
    %499 = vmatpush1.msra.mxu0 0.0
    %500 = vmatprep.subr.mxu0 0.0
    %501 = vmatpush1.msra.mxu0 0.0
    %502 = vmatprep.subr.mxu0 0.0
    %503 = vmatpush1.msra.mxu0 0.0
    %504 = vmatprep.subr.mxu0 0.0
    %505 = vmatpush1.msra.mxu0 0.0
    %506 = vmatprep.subr.mxu0 0.0
    %507 = vmatpush1.msra.mxu0 0.0
    %508 = vmatprep.subr.mxu0 0.0
    %509 = vmatpush1.msra.mxu0 0.0
    %510 = vmatprep.subr.mxu0 0.0
    %511 = vmatpush1.msra.mxu0 0.0
    %512 = vmatprep.subr.mxu0 0.0
    %513 = vmatpush1.msra.mxu0 0.0
    %514 = vmatprep.subr.mxu0 0.0
    %515 = vmatpush1.msra.mxu0 0.0
    %516 = vmatprep.subr.mxu0 0.0
    %517 = vmatpush1.msra.mxu0 0.0
    %518 = vmatprep.subr.mxu0 0.0
    %519 = vmatpush1.msra.mxu0 0.0
    %520 = vmatprep.subr.mxu0 0.0
    %521 = vmatpush1.msra.mxu0 0.0
    %522 = vmatprep.subr.mxu0 0.0
    %523 = vmatpush1.msra.mxu0 0.0
    %524 = vmatprep.subr.mxu0 0.0
    %525 = vmatpush1.msra.mxu0 %v41
    %526 = vmatprep.subr.mxu0 0.0
    %527 = vmatpush2.msra.mxu0 0.0
    %528 = vmatprep.subr.mxu0 0.0
    %529 = vmatpush2.msra.mxu0 0.0
    %530 = vmatprep.subr.mxu0 0.0
    %531 = vmatpush2.msra.mxu0 0.0
    %532 = vmatprep.subr.mxu0 0.0
    %533 = vmatpush2.msra.mxu0 0.0
    %534 = vmatprep.subr.mxu0 0.0
    %535 = vmatpush2.msra.mxu0 0.0
    %536 = vmatprep.subr.mxu0 0.0
    %537 = vmatpush2.msra.mxu0 0.0
    %538 = vmatprep.subr.mxu0 0.0
    %539 = vmatpush2.msra.mxu0 0.0
    %540 = vmatprep.subr.mxu0 0.0
    %541 = vmatpush2.msra.mxu0 0.0
    %542 = vmatprep.subr.mxu0 0.0
    %543 = vmatpush2.msra.mxu0 0.0
    %544 = vmatprep.subr.mxu0 0.0
    %545 = vmatpush2.msra.mxu0 0.0
    %546 = vmatprep.subr.mxu0 0.0
    %547 = vmatpush2.msra.mxu0 0.0
    %548 = vmatprep.subr.mxu0 0.0
    %549 = vmatpush2.msra.mxu0 0.0
    %550 = vmatprep.subr.mxu0 0.0
    %551 = vmatpush2.msra.mxu0 0.0
    %552 = vmatprep.subr.mxu0 0.0
    %553 = vmatpush2.msra.mxu0 0.0
    %554 = vmatprep.subr.mxu0 0.0
    %555 = vmatpush2.msra.mxu0 0.0
    %556 = vmatprep.subr.mxu0 0.0
    %557 = vmatpush2.msra.mxu0 0.0
    %558 = vmatprep.mubr.f32.mxu0 0.0
    %559 = vmatmul.mubr.f32.gmra.mxu0 %v421
    %v560 = vpop.f32.mrf.mxu0
    %v561 = vadd.f32 %v91, %v560
    %v562 = vpop.f32.mrf.mxu0
    %563 = vdwg.mxu0
    %v564 = vld [vmem:[#allocation3] sm:$0xff]
    %v565 = vld [vmem:[#allocation3 + $0x8] sm:$0xff]
    %v566 = vld [vmem:[#allocation3 + $0x10] sm:$0xff]
    %v567 = vld [vmem:[#allocation3 + $0x18] sm:$0xff]
    %v568 = vld [vmem:[#allocation3 + $0x20] sm:$0xff]
    %v569 = vld [vmem:[#allocation3 + $0x28] sm:$0xff]
    %v570 = vld [vmem:[#allocation3 + $0x30] sm:$0xff]
    %v571 = vld [vmem:[#allocation3 + $0x38] sm:$0xff]
    %v572 = vld [vmem:[#allocation3 + $0x40] sm:$0xff]
    %v573 = vld [vmem:[#allocation3 + $0x48] sm:$0xff]
    %v574 = vld [vmem:[#allocation3 + $0x50] sm:$0xff]
    %v575 = vld [vmem:[#allocation3 + $0x58] sm:$0xff]
    %v576 = vld [vmem:[#allocation3 + $0x60] sm:$0xff]
    %v577 = vld [vmem:[#allocation3 + $0x68] sm:$0xff]
    %v578 = vld [vmem:[#allocation3 + $0x70] sm:$0xff]
    %v579 = vld [vmem:[#allocation3 + $0x78] sm:$0xff]
    %v582 = vunpack.c.l.s4 1966171168
    %v583 = vunpack.c.0.s8 %v582
    %v584 = vlaneseq
    %v585 = vshrl.u32 %v584, 7
    %v586 = vsub.s32 %v583, %v585
    %v587 = vrot.slane %v493, %v586
    %v588 = vcombine.high %v587, %v587
    %v590 = vunpack.c.l.s4 1966171168
    %v591 = vunpack.c.0.s8 %v590
    %v592 = vlaneseq
    %v593 = vshrl.u32 %v592, 7
    %v594 = vsub.s32 %v591, %v593
    %v595 = vrot.slane %v587, %v594
    %v597 = vunpack.c.l.s4 1966171168
    %v598 = vunpack.c.0.s8 %v597
    %v599 = vlaneseq
    %v600 = vshrl.u32 %v599, 7
    %v601 = vsub.s32 %v598, %v600
    %v602 = vrot.slane %v588, %v601
    %vm603 = vcmask 31744
    %v604 = vsel %vm603, %v595, 0
    %v607 = vsel %vm603, %v564, 0
    %v610 = vsel %vm603, %v565, 0
    %v613 = vsel %vm603, %v566, 0
    %v616 = vsel %vm603, %v567, 0
    %v619 = vsel %vm603, %v568, 0
    %v622 = vsel %vm603, %v569, 0
    %v625 = vsel %vm603, %v570, 0
    %v628 = vsel %vm603, %v571, 0
    %630 = vmatprep.subr.mxu0 0.0
    %631 = vmatpush1.xpose.msra.mxu0 0.0
    %632 = vmatprep.subr.mxu0 0.0
    %633 = vmatpush1.xpose.msra.mxu0 0.0
    %634 = vmatprep.subr.mxu0 0.0
    %635 = vmatpush1.xpose.msra.mxu0 0.0
    %636 = vmatprep.subr.mxu0 0.0
    %637 = vmatpush1.xpose.msra.mxu0 0.0
    %638 = vmatprep.subr.mxu0 0.0
    %639 = vmatpush1.xpose.msra.mxu0 0.0
    %640 = vmatprep.subr.mxu0 0.0
    %641 = vmatpush1.xpose.msra.mxu0 0.0
    %642 = vmatprep.subr.mxu0 0.0
    %643 = vmatpush1.xpose.msra.mxu0 0.0
    %644 = vmatprep.subr.mxu0 0.0
    %645 = vmatpush1.xpose.msra.mxu0 0.0
    %646 = vmatprep.subr.mxu0 0.0
    %647 = vmatpush1.xpose.msra.mxu0 %v628
    %648 = vmatprep.subr.mxu0 0.0
    %649 = vmatpush1.xpose.msra.mxu0 %v625
    %650 = vmatprep.subr.mxu0 0.0
    %651 = vmatpush1.xpose.msra.mxu0 %v622
    %652 = vmatprep.subr.mxu0 0.0
    %653 = vmatpush1.xpose.msra.mxu0 %v619
    %654 = vmatprep.subr.mxu0 0.0
    %655 = vmatpush1.xpose.msra.mxu0 %v616
    %656 = vmatprep.subr.mxu0 0.0
    %657 = vmatpush1.xpose.msra.mxu0 %v613
    %658 = vmatprep.subr.mxu0 0.0
    %659 = vmatpush1.xpose.msra.mxu0 %v610
    %660 = vmatprep.subr.mxu0 0.0
    %661 = vmatpush1.xpose.msra.mxu0 %v607
    %662 = vmatprep.subr.mxu0 0.0
    %663 = vmatpush2.xpose.msra.mxu0 0.0
    %664 = vmatprep.subr.mxu0 0.0
    %665 = vmatpush2.xpose.msra.mxu0 0.0
    %666 = vmatprep.subr.mxu0 0.0
    %667 = vmatpush2.xpose.msra.mxu0 0.0
    %668 = vmatprep.subr.mxu0 0.0
    %669 = vmatpush2.xpose.msra.mxu0 0.0
    %670 = vmatprep.subr.mxu0 0.0
    %671 = vmatpush2.xpose.msra.mxu0 0.0
    %672 = vmatprep.subr.mxu0 0.0
    %673 = vmatpush2.xpose.msra.mxu0 0.0
    %674 = vmatprep.subr.mxu0 0.0
    %675 = vmatpush2.xpose.msra.mxu0 0.0
    %676 = vmatprep.subr.mxu0 0.0
    %677 = vmatpush2.xpose.msra.mxu0 0.0
    %678 = vmatprep.subr.mxu0 0.0
    %679 = vmatpush2.xpose.msra.mxu0 0.0
    %680 = vmatprep.subr.mxu0 0.0
    %681 = vmatpush2.xpose.msra.mxu0 0.0
    %682 = vmatprep.subr.mxu0 0.0
    %683 = vmatpush2.xpose.msra.mxu0 0.0
    %684 = vmatprep.subr.mxu0 0.0
    %685 = vmatpush2.xpose.msra.mxu0 0.0
    %686 = vmatprep.subr.mxu0 0.0
    %687 = vmatpush2.xpose.msra.mxu0 0.0
    %688 = vmatprep.subr.mxu0 0.0
    %689 = vmatpush2.xpose.msra.mxu0 0.0
    %690 = vmatprep.subr.mxu0 0.0
    %691 = vmatpush2.xpose.msra.mxu0 0.0
    %692 = vmatprep.subr.mxu0 0.0
    %693 = vmatpush2.xpose.msra.mxu0 0.0
    %694 = vmatprep.mubr.f32.mxu0 0.0
    %695 = vmatmul.mubr.f32.gmra.mxu0 %v604
    %v696 = vpop.f32.mrf.mxu0
    %v697 = vadd.f32 0.0, %v696
    %v698 = vpop.f32.mrf.mxu0
    %699 = vdwg.mxu0
    %v700 = vsel %vm603, %v602, 0
    %v703 = vsel %vm603, %v572, 0
    %v706 = vsel %vm603, %v573, 0
    %v709 = vsel %vm603, %v574, 0
    %v712 = vsel %vm603, %v575, 0
    %v715 = vsel %vm603, %v576, 0
    %v718 = vsel %vm603, %v577, 0
    %v721 = vsel %vm603, %v578, 0
    %v724 = vsel %vm603, %v579, 0
    %726 = vmatprep.subr.mxu0 0.0
    %727 = vmatpush1.xpose.msra.mxu0 0.0
    %728 = vmatprep.subr.mxu0 0.0
    %729 = vmatpush1.xpose.msra.mxu0 0.0
    %730 = vmatprep.subr.mxu0 0.0
    %731 = vmatpush1.xpose.msra.mxu0 0.0
    %732 = vmatprep.subr.mxu0 0.0
    %733 = vmatpush1.xpose.msra.mxu0 0.0
    %734 = vmatprep.subr.mxu0 0.0
    %735 = vmatpush1.xpose.msra.mxu0 0.0
    %736 = vmatprep.subr.mxu0 0.0
    %737 = vmatpush1.xpose.msra.mxu0 0.0
    %738 = vmatprep.subr.mxu0 0.0
    %739 = vmatpush1.xpose.msra.mxu0 0.0
    %740 = vmatprep.subr.mxu0 0.0
    %741 = vmatpush1.xpose.msra.mxu0 0.0
    %742 = vmatprep.subr.mxu0 0.0
    %743 = vmatpush1.xpose.msra.mxu0 %v724
    %744 = vmatprep.subr.mxu0 0.0
    %745 = vmatpush1.xpose.msra.mxu0 %v721
    %746 = vmatprep.subr.mxu0 0.0
    %747 = vmatpush1.xpose.msra.mxu0 %v718
    %748 = vmatprep.subr.mxu0 0.0
    %749 = vmatpush1.xpose.msra.mxu0 %v715
    %750 = vmatprep.subr.mxu0 0.0
    %751 = vmatpush1.xpose.msra.mxu0 %v712
    %752 = vmatprep.subr.mxu0 0.0
    %753 = vmatpush1.xpose.msra.mxu0 %v709
    %754 = vmatprep.subr.mxu0 0.0
    %755 = vmatpush1.xpose.msra.mxu0 %v706
    %756 = vmatprep.subr.mxu0 0.0
    %757 = vmatpush1.xpose.msra.mxu0 %v703
    %758 = vmatprep.subr.mxu0 0.0
    %759 = vmatpush2.xpose.msra.mxu0 0.0
    %760 = vmatprep.subr.mxu0 0.0
    %761 = vmatpush2.xpose.msra.mxu0 0.0
    %762 = vmatprep.subr.mxu0 0.0
    %763 = vmatpush2.xpose.msra.mxu0 0.0
    %764 = vmatprep.subr.mxu0 0.0
    %765 = vmatpush2.xpose.msra.mxu0 0.0
    %766 = vmatprep.subr.mxu0 0.0
    %767 = vmatpush2.xpose.msra.mxu0 0.0
    %768 = vmatprep.subr.mxu0 0.0
    %769 = vmatpush2.xpose.msra.mxu0 0.0
    %770 = vmatprep.subr.mxu0 0.0
    %771 = vmatpush2.xpose.msra.mxu0 0.0
    %772 = vmatprep.subr.mxu0 0.0
    %773 = vmatpush2.xpose.msra.mxu0 0.0
    %774 = vmatprep.subr.mxu0 0.0
    %775 = vmatpush2.xpose.msra.mxu0 0.0
    %776 = vmatprep.subr.mxu0 0.0
    %777 = vmatpush2.xpose.msra.mxu0 0.0
    %778 = vmatprep.subr.mxu0 0.0
    %779 = vmatpush2.xpose.msra.mxu0 0.0
    %780 = vmatprep.subr.mxu0 0.0
    %781 = vmatpush2.xpose.msra.mxu0 0.0
    %782 = vmatprep.subr.mxu0 0.0
    %783 = vmatpush2.xpose.msra.mxu0 0.0
    %784 = vmatprep.subr.mxu0 0.0
    %785 = vmatpush2.xpose.msra.mxu0 0.0
    %786 = vmatprep.subr.mxu0 0.0
    %787 = vmatpush2.xpose.msra.mxu0 0.0
    %788 = vmatprep.subr.mxu0 0.0
    %789 = vmatpush2.xpose.msra.mxu0 0.0
    %790 = vmatprep.mubr.f32.mxu0 0.0
    %791 = vmatmul.mubr.f32.gmra.mxu0 %v700
    %v792 = vpop.f32.mrf.mxu0
    %v793 = vadd.f32 0.0, %v792
    %v794 = vpop.f32.mrf.mxu0
    %795 = vdwg.mxu0
    %v796 = vmul.f32 %v493, %v561
    %vm797 = vcmask 25600
    %v798 = vsel %vm797, %v796, 0.0
    %799 = vadd.xlane.f32.xlu0 %v798
    %v800 = vpop.xlane.xlu0 %799
    %v803 = vrot.slane %v793, 7
    %vm804 = vcmask 1041409
    %v805 = vsel %vm804, %v803, %v697
    %vm807 = vcmask 517120
    %v808 = vsel %vm807, %v805, -inf
    %809 = vmax.xlane.f32.xlu0 %v808
    %v810 = vpop.xlane.xlu0 %809
    %v811 = vmax.f32 %v810, %v800
    %v812 = vsub.f32 %v800, %v811
    %v813 = vmul.f32 %v812, 1.442695
    %v814 = vpow.pop %v813
    %v816 = vrot.slane %v811, 1
    %v819 = vsub.f32 %v697, %v811
    %v820 = vsub.f32 %v793, %v816
    %v821 = vmul.f32 %v819, 1.442695
    %v822 = vpow.pop %v821
    %v823 = vmul.f32 %v820, 1.442695
    %v824 = vpow.pop %v823
    %v827 = vrot.slane %v824, 7
    %v828 = vsel %vm804, %v827, %v822
    %v830 = vsel %vm807, %v828, 0.0
    %831 = vadd.xlane.f32.xlu0 %v830
    %v832 = vpop.xlane.xlu0 %831
    %v833 = vadd.f32 %v814, %v832
    %v834 = vrcp.pop %v833
    %835 = vrot.lane.b32.xlu0 %v564, 120
    %v836 = vpop.permute.xlu0 %835
    %837 = vrot.lane.b32.xlu0 %v565, 120
    %v838 = vpop.permute.xlu0 %837
    %839 = vrot.lane.b32.xlu0 %v566, 120
    %v840 = vpop.permute.xlu0 %839
    %841 = vrot.lane.b32.xlu0 %v567, 120
    %v842 = vpop.permute.xlu0 %841
    %843 = vrot.lane.b32.xlu0 %v568, 120
    %v844 = vpop.permute.xlu0 %843
    %845 = vrot.lane.b32.xlu0 %v569, 120
    %v846 = vpop.permute.xlu0 %845
    %847 = vrot.lane.b32.xlu0 %v570, 120
    %v848 = vpop.permute.xlu0 %847
    %849 = vrot.lane.b32.xlu0 %v571, 120
    %v850 = vpop.permute.xlu0 %849
    %vm859 = vcmask 523264
    %v860 = vsel %vm859, %v822, 0
    %862 = vmatprep.subr.mxu0 0.0
    %863 = vmatpush1.msra.mxu0 0.0
    %864 = vmatprep.subr.mxu0 0.0
    %865 = vmatpush1.msra.mxu0 0.0
    %866 = vmatprep.subr.mxu0 0.0
    %867 = vmatpush1.msra.mxu0 0.0
    %868 = vmatprep.subr.mxu0 0.0
    %869 = vmatpush1.msra.mxu0 0.0
    %870 = vmatprep.subr.mxu0 0.0
    %871 = vmatpush1.msra.mxu0 0.0
    %872 = vmatprep.subr.mxu0 0.0
    %873 = vmatpush1.msra.mxu0 0.0
    %874 = vmatprep.subr.mxu0 0.0
    %875 = vmatpush1.msra.mxu0 0.0
    %876 = vmatprep.subr.mxu0 0.0
    %877 = vmatpush1.msra.mxu0 0.0
    %878 = vmatprep.subr.mxu0 0.0
    %879 = vmatpush1.msra.mxu0 %v850
    %880 = vmatprep.subr.mxu0 0.0
    %881 = vmatpush1.msra.mxu0 %v848
    %882 = vmatprep.subr.mxu0 0.0
    %883 = vmatpush1.msra.mxu0 %v846
    %884 = vmatprep.subr.mxu0 0.0
    %885 = vmatpush1.msra.mxu0 %v844
    %886 = vmatprep.subr.mxu0 0.0
    %887 = vmatpush1.msra.mxu0 %v842
    %888 = vmatprep.subr.mxu0 0.0
    %889 = vmatpush1.msra.mxu0 %v840
    %890 = vmatprep.subr.mxu0 0.0
    %891 = vmatpush1.msra.mxu0 %v838
    %892 = vmatprep.subr.mxu0 0.0
    %893 = vmatpush1.msra.mxu0 %v836
    %894 = vmatprep.subr.mxu0 0.0
    %895 = vmatpush2.msra.mxu0 0.0
    %896 = vmatprep.subr.mxu0 0.0
    %897 = vmatpush2.msra.mxu0 0.0
    %898 = vmatprep.subr.mxu0 0.0
    %899 = vmatpush2.msra.mxu0 0.0
    %900 = vmatprep.subr.mxu0 0.0
    %901 = vmatpush2.msra.mxu0 0.0
    %902 = vmatprep.subr.mxu0 0.0
    %903 = vmatpush2.msra.mxu0 0.0
    %904 = vmatprep.subr.mxu0 0.0
    %905 = vmatpush2.msra.mxu0 0.0
    %906 = vmatprep.subr.mxu0 0.0
    %907 = vmatpush2.msra.mxu0 0.0
    %908 = vmatprep.subr.mxu0 0.0
    %909 = vmatpush2.msra.mxu0 0.0
    %910 = vmatprep.subr.mxu0 0.0
    %911 = vmatpush2.msra.mxu0 0.0
    %912 = vmatprep.subr.mxu0 0.0
    %913 = vmatpush2.msra.mxu0 0.0
    %914 = vmatprep.subr.mxu0 0.0
    %915 = vmatpush2.msra.mxu0 0.0
    %916 = vmatprep.subr.mxu0 0.0
    %917 = vmatpush2.msra.mxu0 0.0
    %918 = vmatprep.subr.mxu0 0.0
    %919 = vmatpush2.msra.mxu0 0.0
    %920 = vmatprep.subr.mxu0 0.0
    %921 = vmatpush2.msra.mxu0 0.0
    %922 = vmatprep.subr.mxu0 0.0
    %923 = vmatpush2.msra.mxu0 0.0
    %924 = vmatprep.subr.mxu0 0.0
    %925 = vmatpush2.msra.mxu0 0.0
    %926 = vmatprep.mubr.f32.mxu0 0.0
    %927 = vmatmul.mubr.f32.gmra.mxu0 %v860
    %v928 = vpop.f32.mrf.mxu0
    %v929 = vadd.f32 0.0, %v928
    %v930 = vpop.f32.mrf.mxu0
    %931 = vdwg.mxu0
    %932 = vrot.lane.b32.xlu0 %v572, 120
    %v933 = vpop.permute.xlu0 %932
    %934 = vrot.lane.b32.xlu0 %v573, 120
    %v935 = vpop.permute.xlu0 %934
    %936 = vrot.lane.b32.xlu0 %v574, 120
    %v937 = vpop.permute.xlu0 %936
    %938 = vrot.lane.b32.xlu0 %v575, 120
    %v939 = vpop.permute.xlu0 %938
    %940 = vrot.lane.b32.xlu0 %v576, 120
    %v941 = vpop.permute.xlu0 %940
    %942 = vrot.lane.b32.xlu0 %v577, 120
    %v943 = vpop.permute.xlu0 %942
    %944 = vrot.lane.b32.xlu0 %v578, 120
    %v945 = vpop.permute.xlu0 %944
    %946 = vrot.lane.b32.xlu0 %v579, 120
    %v947 = vpop.permute.xlu0 %946
    %v956 = vsel %vm859, %v824, 0
    %958 = vmatprep.subr.mxu0 0.0
    %959 = vmatpush1.msra.mxu0 0.0
    %960 = vmatprep.subr.mxu0 0.0
    %961 = vmatpush1.msra.mxu0 0.0
    %962 = vmatprep.subr.mxu0 0.0
    %963 = vmatpush1.msra.mxu0 0.0
    %964 = vmatprep.subr.mxu0 0.0
    %965 = vmatpush1.msra.mxu0 0.0
    %966 = vmatprep.subr.mxu0 0.0
    %967 = vmatpush1.msra.mxu0 0.0
    %968 = vmatprep.subr.mxu0 0.0
    %969 = vmatpush1.msra.mxu0 0.0
    %970 = vmatprep.subr.mxu0 0.0
    %971 = vmatpush1.msra.mxu0 0.0
    %972 = vmatprep.subr.mxu0 0.0
    %973 = vmatpush1.msra.mxu0 0.0
    %974 = vmatprep.subr.mxu0 0.0
    %975 = vmatpush1.msra.mxu0 %v947
    %976 = vmatprep.subr.mxu0 0.0
    %977 = vmatpush1.msra.mxu0 %v945
    %978 = vmatprep.subr.mxu0 0.0
    %979 = vmatpush1.msra.mxu0 %v943
    %980 = vmatprep.subr.mxu0 0.0
    %981 = vmatpush1.msra.mxu0 %v941
    %982 = vmatprep.subr.mxu0 0.0
    %983 = vmatpush1.msra.mxu0 %v939
    %984 = vmatprep.subr.mxu0 0.0
    %985 = vmatpush1.msra.mxu0 %v937
    %986 = vmatprep.subr.mxu0 0.0
    %987 = vmatpush1.msra.mxu0 %v935
    %988 = vmatprep.subr.mxu0 0.0
    %989 = vmatpush1.msra.mxu0 %v933
    %990 = vmatprep.subr.mxu0 0.0
    %991 = vmatpush2.msra.mxu0 0.0
    %992 = vmatprep.subr.mxu0 0.0
    %993 = vmatpush2.msra.mxu0 0.0
    %994 = vmatprep.subr.mxu0 0.0
    %995 = vmatpush2.msra.mxu0 0.0
    %996 = vmatprep.subr.mxu0 0.0
    %997 = vmatpush2.msra.mxu0 0.0
    %998 = vmatprep.subr.mxu0 0.0
    %999 = vmatpush2.msra.mxu0 0.0
    %1000 = vmatprep.subr.mxu0 0.0
    %1001 = vmatpush2.msra.mxu0 0.0
    %1002 = vmatprep.subr.mxu0 0.0
    %1003 = vmatpush2.msra.mxu0 0.0
    %1004 = vmatprep.subr.mxu0 0.0
    %1005 = vmatpush2.msra.mxu0 0.0
    %1006 = vmatprep.subr.mxu0 0.0
    %1007 = vmatpush2.msra.mxu0 0.0
    %1008 = vmatprep.subr.mxu0 0.0
    %1009 = vmatpush2.msra.mxu0 0.0
    %1010 = vmatprep.subr.mxu0 0.0
    %1011 = vmatpush2.msra.mxu0 0.0
    %1012 = vmatprep.subr.mxu0 0.0
    %1013 = vmatpush2.msra.mxu0 0.0
    %1014 = vmatprep.subr.mxu0 0.0
    %1015 = vmatpush2.msra.mxu0 0.0
    %1016 = vmatprep.subr.mxu0 0.0
    %1017 = vmatpush2.msra.mxu0 0.0
    %1018 = vmatprep.subr.mxu0 0.0
    %1019 = vmatpush2.msra.mxu0 0.0
    %1020 = vmatprep.subr.mxu0 0.0
    %1021 = vmatpush2.msra.mxu0 0.0
    %1022 = vmatprep.mubr.f32.mxu0 0.0
    %1023 = vmatmul.mubr.f32.gmra.mxu0 %v956
    %v1024 = vpop.f32.mrf.mxu0
    %v1025 = vadd.f32 0.0, %v1024
    %v1026 = vpop.f32.mrf.mxu0
    %1027 = vdwg.mxu0
    %v1028 = vmul.f32 %v814, %v561
    %v1031 = vrot.slane %v1025, 7
    %v1032 = vsel %vm804, %v1031, %v929
    %1033 = vrot.lane.b32.xlu0 %v1032, 8
    %v1034 = vpop.permute.xlu0 %1033
    %v1036 = vadd.f32 %v1028, %v1034
    %v1037 = vmul.f32 %v1036, %v834
    %v1038 = vld [vmem:[%s7] sm:$0xf]
    %v1039 = vlaneseq
    %v1040 = vshrl.u32 %v1039, 7
    %v1041 = vsub.s32 0, %v1040
    %v1042 = vrot.slane %v595, %v1041
    %1043 = vrot.lane.b32.xlu0 %v1042, 124
    %v1044 = vpop.permute.xlu0 %1043
    %1045 = vrot.lane.b32.xlu0 %v564, 124
    %v1046 = vpop.permute.xlu0 %1045
    %1047 = vrot.lane.b32.xlu0 %v565, 124
    %v1048 = vpop.permute.xlu0 %1047
    %1049 = vrot.lane.b32.xlu0 %v566, 124
    %v1050 = vpop.permute.xlu0 %1049
    %1051 = vrot.lane.b32.xlu0 %v567, 124
    %v1052 = vpop.permute.xlu0 %1051
    %1053 = vrot.lane.b32.xlu0 %v568, 124
    %v1054 = vpop.permute.xlu0 %1053
    %1055 = vrot.lane.b32.xlu0 %v569, 124
    %v1056 = vpop.permute.xlu0 %1055
    %1057 = vrot.lane.b32.xlu0 %v570, 124
    %v1058 = vpop.permute.xlu0 %1057
    %1059 = vrot.lane.b32.xlu0 %v571, 124
    %v1060 = vpop.permute.xlu0 %1059
    %v1061 = vsel %vm603, %v1044, 0
    %v1063 = vsel %vm603, %v1046, 0
    %v1065 = vsel %vm603, %v1048, 0
    %v1067 = vsel %vm603, %v1050, 0
    %v1069 = vsel %vm603, %v1052, 0
    %v1071 = vsel %vm603, %v1054, 0
    %v1073 = vsel %vm603, %v1056, 0
    %v1075 = vsel %vm603, %v1058, 0
    %v1077 = vsel %vm603, %v1060, 0
    %1079 = vmatprep.subr.mxu0 0.0
    %1080 = vmatpush1.xpose.msra.mxu0 0.0
    %1081 = vmatprep.subr.mxu0 0.0
    %1082 = vmatpush1.xpose.msra.mxu0 0.0
    %1083 = vmatprep.subr.mxu0 0.0
    %1084 = vmatpush1.xpose.msra.mxu0 0.0
    %1085 = vmatprep.subr.mxu0 0.0
    %1086 = vmatpush1.xpose.msra.mxu0 0.0
    %1087 = vmatprep.subr.mxu0 0.0
    %1088 = vmatpush1.xpose.msra.mxu0 0.0
    %1089 = vmatprep.subr.mxu0 0.0
    %1090 = vmatpush1.xpose.msra.mxu0 0.0
    %1091 = vmatprep.subr.mxu0 0.0
    %1092 = vmatpush1.xpose.msra.mxu0 0.0
    %1093 = vmatprep.subr.mxu0 0.0
    %1094 = vmatpush1.xpose.msra.mxu0 0.0
    %1095 = vmatprep.subr.mxu0 0.0
    %1096 = vmatpush1.xpose.msra.mxu0 %v1077
    %1097 = vmatprep.subr.mxu0 0.0
    %1098 = vmatpush1.xpose.msra.mxu0 %v1075
    %1099 = vmatprep.subr.mxu0 0.0
    %1100 = vmatpush1.xpose.msra.mxu0 %v1073
    %1101 = vmatprep.subr.mxu0 0.0
    %1102 = vmatpush1.xpose.msra.mxu0 %v1071
    %1103 = vmatprep.subr.mxu0 0.0
    %1104 = vmatpush1.xpose.msra.mxu0 %v1069
    %1105 = vmatprep.subr.mxu0 0.0
    %1106 = vmatpush1.xpose.msra.mxu0 %v1067
    %1107 = vmatprep.subr.mxu0 0.0
    %1108 = vmatpush1.xpose.msra.mxu0 %v1065
    %1109 = vmatprep.subr.mxu0 0.0
    %1110 = vmatpush1.xpose.msra.mxu0 %v1063
    %1111 = vmatprep.subr.mxu0 0.0
    %1112 = vmatpush2.xpose.msra.mxu0 0.0
    %1113 = vmatprep.subr.mxu0 0.0
    %1114 = vmatpush2.xpose.msra.mxu0 0.0
    %1115 = vmatprep.subr.mxu0 0.0
    %1116 = vmatpush2.xpose.msra.mxu0 0.0
    %1117 = vmatprep.subr.mxu0 0.0
    %1118 = vmatpush2.xpose.msra.mxu0 0.0
    %1119 = vmatprep.subr.mxu0 0.0
    %1120 = vmatpush2.xpose.msra.mxu0 0.0
    %1121 = vmatprep.subr.mxu0 0.0
    %1122 = vmatpush2.xpose.msra.mxu0 0.0
    %1123 = vmatprep.subr.mxu0 0.0
    %1124 = vmatpush2.xpose.msra.mxu0 0.0
    %1125 = vmatprep.subr.mxu0 0.0
    %1126 = vmatpush2.xpose.msra.mxu0 0.0
    %1127 = vmatprep.subr.mxu0 0.0
    %1128 = vmatpush2.xpose.msra.mxu0 0.0
    %1129 = vmatprep.subr.mxu0 0.0
    %1130 = vmatpush2.xpose.msra.mxu0 0.0
    %1131 = vmatprep.subr.mxu0 0.0
    %1132 = vmatpush2.xpose.msra.mxu0 0.0
    %1133 = vmatprep.subr.mxu0 0.0
    %1134 = vmatpush2.xpose.msra.mxu0 0.0
    %1135 = vmatprep.subr.mxu0 0.0
    %1136 = vmatpush2.xpose.msra.mxu0 0.0
    %1137 = vmatprep.subr.mxu0 0.0
    %1138 = vmatpush2.xpose.msra.mxu0 0.0
    %1139 = vmatprep.subr.mxu0 0.0
    %1140 = vmatpush2.xpose.msra.mxu0 0.0
    %1141 = vmatprep.subr.mxu0 0.0
    %1142 = vmatpush2.xpose.msra.mxu0 0.0
    %1143 = vmatprep.mubr.f32.mxu0 0.0
    %1144 = vmatmul.mubr.f32.gmra.mxu0 %v1061
    %v1145 = vpop.f32.mrf.mxu0
    %v1146 = vadd.f32 0.0, %v1145
    %v1147 = vpop.f32.mrf.mxu0
    %1148 = vdwg.mxu0
    %v1149 = vlaneseq
    %v1150 = vshrl.u32 %v1149, 7
    %v1151 = vsub.s32 0, %v1150
    %v1152 = vrot.slane %v602, %v1151
    %1153 = vrot.lane.b32.xlu0 %v1152, 124
    %v1154 = vpop.permute.xlu0 %1153
    %1155 = vrot.lane.b32.xlu0 %v572, 124
    %v1156 = vpop.permute.xlu0 %1155
    %1157 = vrot.lane.b32.xlu0 %v573, 124
    %v1158 = vpop.permute.xlu0 %1157
    %1159 = vrot.lane.b32.xlu0 %v574, 124
    %v1160 = vpop.permute.xlu0 %1159
    %1161 = vrot.lane.b32.xlu0 %v575, 124
    %v1162 = vpop.permute.xlu0 %1161
    %1163 = vrot.lane.b32.xlu0 %v576, 124
    %v1164 = vpop.permute.xlu0 %1163
    %1165 = vrot.lane.b32.xlu0 %v577, 124
    %v1166 = vpop.permute.xlu0 %1165
    %1167 = vrot.lane.b32.xlu0 %v578, 124
    %v1168 = vpop.permute.xlu0 %1167
    %1169 = vrot.lane.b32.xlu0 %v579, 124
    %v1170 = vpop.permute.xlu0 %1169
    %v1171 = vsel %vm603, %v1154, 0
    %v1173 = vsel %vm603, %v1156, 0
    %v1175 = vsel %vm603, %v1158, 0
    %v1177 = vsel %vm603, %v1160, 0
    %v1179 = vsel %vm603, %v1162, 0
    %v1181 = vsel %vm603, %v1164, 0
    %v1183 = vsel %vm603, %v1166, 0
    %v1185 = vsel %vm603, %v1168, 0
    %v1187 = vsel %vm603, %v1170, 0
    %1189 = vmatprep.subr.mxu0 0.0
    %1190 = vmatpush1.xpose.msra.mxu0 0.0
    %1191 = vmatprep.subr.mxu0 0.0
    %1192 = vmatpush1.xpose.msra.mxu0 0.0
    %1193 = vmatprep.subr.mxu0 0.0
    %1194 = vmatpush1.xpose.msra.mxu0 0.0
    %1195 = vmatprep.subr.mxu0 0.0
    %1196 = vmatpush1.xpose.msra.mxu0 0.0
    %1197 = vmatprep.subr.mxu0 0.0
    %1198 = vmatpush1.xpose.msra.mxu0 0.0
    %1199 = vmatprep.subr.mxu0 0.0
    %1200 = vmatpush1.xpose.msra.mxu0 0.0
    %1201 = vmatprep.subr.mxu0 0.0
    %1202 = vmatpush1.xpose.msra.mxu0 0.0
    %1203 = vmatprep.subr.mxu0 0.0
    %1204 = vmatpush1.xpose.msra.mxu0 0.0
    %1205 = vmatprep.subr.mxu0 0.0
    %1206 = vmatpush1.xpose.msra.mxu0 %v1187
    %1207 = vmatprep.subr.mxu0 0.0
    %1208 = vmatpush1.xpose.msra.mxu0 %v1185
    %1209 = vmatprep.subr.mxu0 0.0
    %1210 = vmatpush1.xpose.msra.mxu0 %v1183
    %1211 = vmatprep.subr.mxu0 0.0
    %1212 = vmatpush1.xpose.msra.mxu0 %v1181
    %1213 = vmatprep.subr.mxu0 0.0
    %1214 = vmatpush1.xpose.msra.mxu0 %v1179
    %1215 = vmatprep.subr.mxu0 0.0
    %1216 = vmatpush1.xpose.msra.mxu0 %v1177
    %1217 = vmatprep.subr.mxu0 0.0
    %1218 = vmatpush1.xpose.msra.mxu0 %v1175
    %1219 = vmatprep.subr.mxu0 0.0
    %1220 = vmatpush1.xpose.msra.mxu0 %v1173
    %1221 = vmatprep.subr.mxu0 0.0
    %1222 = vmatpush2.xpose.msra.mxu0 0.0
    %1223 = vmatprep.subr.mxu0 0.0
    %1224 = vmatpush2.xpose.msra.mxu0 0.0
    %1225 = vmatprep.subr.mxu0 0.0
    %1226 = vmatpush2.xpose.msra.mxu0 0.0
    %1227 = vmatprep.subr.mxu0 0.0
    %1228 = vmatpush2.xpose.msra.mxu0 0.0
    %1229 = vmatprep.subr.mxu0 0.0
    %1230 = vmatpush2.xpose.msra.mxu0 0.0
    %1231 = vmatprep.subr.mxu0 0.0
    %1232 = vmatpush2.xpose.msra.mxu0 0.0
    %1233 = vmatprep.subr.mxu0 0.0
    %1234 = vmatpush2.xpose.msra.mxu0 0.0
    %1235 = vmatprep.subr.mxu0 0.0
    %1236 = vmatpush2.xpose.msra.mxu0 0.0
    %1237 = vmatprep.subr.mxu0 0.0
    %1238 = vmatpush2.xpose.msra.mxu0 0.0
    %1239 = vmatprep.subr.mxu0 0.0
    %1240 = vmatpush2.xpose.msra.mxu0 0.0
    %1241 = vmatprep.subr.mxu0 0.0
    %1242 = vmatpush2.xpose.msra.mxu0 0.0
    %1243 = vmatprep.subr.mxu0 0.0
    %1244 = vmatpush2.xpose.msra.mxu0 0.0
    %1245 = vmatprep.subr.mxu0 0.0
    %1246 = vmatpush2.xpose.msra.mxu0 0.0
    %1247 = vmatprep.subr.mxu0 0.0
    %1248 = vmatpush2.xpose.msra.mxu0 0.0
    %1249 = vmatprep.subr.mxu0 0.0
    %1250 = vmatpush2.xpose.msra.mxu0 0.0
    %1251 = vmatprep.subr.mxu0 0.0
    %1252 = vmatpush2.xpose.msra.mxu0 0.0
    %1253 = vmatprep.mubr.f32.mxu0 0.0
    %1254 = vmatmul.mubr.f32.gmra.mxu0 %v1171
    %v1255 = vpop.f32.mrf.mxu0
    %v1256 = vadd.f32 0.0, %v1255
    %v1257 = vpop.f32.mrf.mxu0
    %1258 = vdwg.mxu0
    %1260 = vrot.lane.b32.xlu0 %v796, 124
    %v1261 = vpop.permute.xlu0 %1260
    %v1263 = vsel %vm797, %v1261, 0.0
    %1264 = vadd.xlane.f32.xlu0 %v1263
    %v1265 = vpop.xlane.xlu0 %1264
    %v1268 = vrot.slane %v1256, 7
    %v1269 = vsel %vm804, %v1268, %v1146
    %v1271 = vsel %vm807, %v1269, -inf
    %1272 = vmax.xlane.f32.xlu0 %v1271
    %v1273 = vpop.xlane.xlu0 %1272
    %v1274 = vmax.f32 %v1273, %v1265
    %v1275 = vsub.f32 %v1265, %v1274
    %v1276 = vmul.f32 %v1275, 1.442695
    %v1277 = vpow.pop %v1276
    %v1279 = vrot.slane %v1274, 1
    %v1282 = vsub.f32 %v1146, %v1274
    %v1283 = vsub.f32 %v1256, %v1279
    %v1284 = vmul.f32 %v1282, 1.442695
    %v1285 = vpow.pop %v1284
    %v1286 = vmul.f32 %v1283, 1.442695
    %v1287 = vpow.pop %v1286
    %v1290 = vrot.slane %v1287, 7
    %v1291 = vsel %vm804, %v1290, %v1285
    %v1293 = vsel %vm807, %v1291, 0.0
    %1294 = vadd.xlane.f32.xlu0 %v1293
    %v1295 = vpop.xlane.xlu0 %1294
    %v1296 = vadd.f32 %v1277, %v1295
    %v1297 = vrcp.pop %v1296
    %1298 = vrot.lane.b32.xlu0 %v564, 116
    %v1299 = vpop.permute.xlu0 %1298
    %1300 = vrot.lane.b32.xlu0 %v565, 116
    %v1301 = vpop.permute.xlu0 %1300
    %1302 = vrot.lane.b32.xlu0 %v566, 116
    %v1303 = vpop.permute.xlu0 %1302
    %1304 = vrot.lane.b32.xlu0 %v567, 116
    %v1305 = vpop.permute.xlu0 %1304
    %1306 = vrot.lane.b32.xlu0 %v568, 116
    %v1307 = vpop.permute.xlu0 %1306
    %1308 = vrot.lane.b32.xlu0 %v569, 116
    %v1309 = vpop.permute.xlu0 %1308
    %1310 = vrot.lane.b32.xlu0 %v570, 116
    %v1311 = vpop.permute.xlu0 %1310
    %1312 = vrot.lane.b32.xlu0 %v571, 116
    %v1313 = vpop.permute.xlu0 %1312
    %v1322 = vsel %vm859, %v1285, 0
    %1324 = vmatprep.subr.mxu0 0.0
    %1325 = vmatpush1.msra.mxu0 0.0
    %1326 = vmatprep.subr.mxu0 0.0
    %1327 = vmatpush1.msra.mxu0 0.0
    %1328 = vmatprep.subr.mxu0 0.0
    %1329 = vmatpush1.msra.mxu0 0.0
    %1330 = vmatprep.subr.mxu0 0.0
    %1331 = vmatpush1.msra.mxu0 0.0
    %1332 = vmatprep.subr.mxu0 0.0
    %1333 = vmatpush1.msra.mxu0 0.0
    %1334 = vmatprep.subr.mxu0 0.0
    %1335 = vmatpush1.msra.mxu0 0.0
    %1336 = vmatprep.subr.mxu0 0.0
    %1337 = vmatpush1.msra.mxu0 0.0
    %1338 = vmatprep.subr.mxu0 0.0
    %1339 = vmatpush1.msra.mxu0 0.0
    %1340 = vmatprep.subr.mxu0 0.0
    %1341 = vmatpush1.msra.mxu0 %v1313
    %1342 = vmatprep.subr.mxu0 0.0
    %1343 = vmatpush1.msra.mxu0 %v1311
    %1344 = vmatprep.subr.mxu0 0.0
    %1345 = vmatpush1.msra.mxu0 %v1309
    %1346 = vmatprep.subr.mxu0 0.0
    %1347 = vmatpush1.msra.mxu0 %v1307
    %1348 = vmatprep.subr.mxu0 0.0
    %1349 = vmatpush1.msra.mxu0 %v1305
    %1350 = vmatprep.subr.mxu0 0.0
    %1351 = vmatpush1.msra.mxu0 %v1303
    %1352 = vmatprep.subr.mxu0 0.0
    %1353 = vmatpush1.msra.mxu0 %v1301
    %1354 = vmatprep.subr.mxu0 0.0
    %1355 = vmatpush1.msra.mxu0 %v1299
    %1356 = vmatprep.subr.mxu0 0.0
    %1357 = vmatpush2.msra.mxu0 0.0
    %1358 = vmatprep.subr.mxu0 0.0
    %1359 = vmatpush2.msra.mxu0 0.0
    %1360 = vmatprep.subr.mxu0 0.0
    %1361 = vmatpush2.msra.mxu0 0.0
    %1362 = vmatprep.subr.mxu0 0.0
    %1363 = vmatpush2.msra.mxu0 0.0
    %1364 = vmatprep.subr.mxu0 0.0
    %1365 = vmatpush2.msra.mxu0 0.0
    %1366 = vmatprep.subr.mxu0 0.0
    %1367 = vmatpush2.msra.mxu0 0.0
    %1368 = vmatprep.subr.mxu0 0.0
    %1369 = vmatpush2.msra.mxu0 0.0
    %1370 = vmatprep.subr.mxu0 0.0
    %1371 = vmatpush2.msra.mxu0 0.0
    %1372 = vmatprep.subr.mxu0 0.0
    %1373 = vmatpush2.msra.mxu0 0.0
    %1374 = vmatprep.subr.mxu0 0.0
    %1375 = vmatpush2.msra.mxu0 0.0
    %1376 = vmatprep.subr.mxu0 0.0
    %1377 = vmatpush2.msra.mxu0 0.0
    %1378 = vmatprep.subr.mxu0 0.0
    %1379 = vmatpush2.msra.mxu0 0.0
    %1380 = vmatprep.subr.mxu0 0.0
    %1381 = vmatpush2.msra.mxu0 0.0
    %1382 = vmatprep.subr.mxu0 0.0
    %1383 = vmatpush2.msra.mxu0 0.0
    %1384 = vmatprep.subr.mxu0 0.0
    %1385 = vmatpush2.msra.mxu0 0.0
    %1386 = vmatprep.subr.mxu0 0.0
    %1387 = vmatpush2.msra.mxu0 0.0
    %1388 = vmatprep.mubr.f32.mxu0 0.0
    %1389 = vmatmul.mubr.f32.gmra.mxu0 %v1322
    %v1390 = vpop.f32.mrf.mxu0
    %v1391 = vadd.f32 0.0, %v1390
    %v1392 = vpop.f32.mrf.mxu0
    %1393 = vdwg.mxu0
    %1394 = vrot.lane.b32.xlu0 %v572, 116
    %v1395 = vpop.permute.xlu0 %1394
    %1396 = vrot.lane.b32.xlu0 %v573, 116
    %v1397 = vpop.permute.xlu0 %1396
    %1398 = vrot.lane.b32.xlu0 %v574, 116
    %v1399 = vpop.permute.xlu0 %1398
    %1400 = vrot.lane.b32.xlu0 %v575, 116
    %v1401 = vpop.permute.xlu0 %1400
    %1402 = vrot.lane.b32.xlu0 %v576, 116
    %v1403 = vpop.permute.xlu0 %1402
    %1404 = vrot.lane.b32.xlu0 %v577, 116
    %v1405 = vpop.permute.xlu0 %1404
    %1406 = vrot.lane.b32.xlu0 %v578, 116
    %v1407 = vpop.permute.xlu0 %1406
    %1408 = vrot.lane.b32.xlu0 %v579, 116
    %v1409 = vpop.permute.xlu0 %1408
    %v1418 = vsel %vm859, %v1287, 0
    %1420 = vmatprep.subr.mxu0 0.0
    %1421 = vmatpush1.msra.mxu0 0.0
    %1422 = vmatprep.subr.mxu0 0.0
    %1423 = vmatpush1.msra.mxu0 0.0
    %1424 = vmatprep.subr.mxu0 0.0
    %1425 = vmatpush1.msra.mxu0 0.0
    %1426 = vmatprep.subr.mxu0 0.0
    %1427 = vmatpush1.msra.mxu0 0.0
    %1428 = vmatprep.subr.mxu0 0.0
    %1429 = vmatpush1.msra.mxu0 0.0
    %1430 = vmatprep.subr.mxu0 0.0
    %1431 = vmatpush1.msra.mxu0 0.0
    %1432 = vmatprep.subr.mxu0 0.0
    %1433 = vmatpush1.msra.mxu0 0.0
    %1434 = vmatprep.subr.mxu0 0.0
    %1435 = vmatpush1.msra.mxu0 0.0
    %1436 = vmatprep.subr.mxu0 0.0
    %1437 = vmatpush1.msra.mxu0 %v1409
    %1438 = vmatprep.subr.mxu0 0.0
    %1439 = vmatpush1.msra.mxu0 %v1407
    %1440 = vmatprep.subr.mxu0 0.0
    %1441 = vmatpush1.msra.mxu0 %v1405
    %1442 = vmatprep.subr.mxu0 0.0
    %1443 = vmatpush1.msra.mxu0 %v1403
    %1444 = vmatprep.subr.mxu0 0.0
    %1445 = vmatpush1.msra.mxu0 %v1401
    %1446 = vmatprep.subr.mxu0 0.0
    %1447 = vmatpush1.msra.mxu0 %v1399
    %1448 = vmatprep.subr.mxu0 0.0
    %1449 = vmatpush1.msra.mxu0 %v1397
    %1450 = vmatprep.subr.mxu0 0.0
    %1451 = vmatpush1.msra.mxu0 %v1395
    %1452 = vmatprep.subr.mxu0 0.0
    %1453 = vmatpush2.msra.mxu0 0.0
    %1454 = vmatprep.subr.mxu0 0.0
    %1455 = vmatpush2.msra.mxu0 0.0
    %1456 = vmatprep.subr.mxu0 0.0
    %1457 = vmatpush2.msra.mxu0 0.0
    %1458 = vmatprep.subr.mxu0 0.0
    %1459 = vmatpush2.msra.mxu0 0.0
    %1460 = vmatprep.subr.mxu0 0.0
    %1461 = vmatpush2.msra.mxu0 0.0
    %1462 = vmatprep.subr.mxu0 0.0
    %1463 = vmatpush2.msra.mxu0 0.0
    %1464 = vmatprep.subr.mxu0 0.0
    %1465 = vmatpush2.msra.mxu0 0.0
    %1466 = vmatprep.subr.mxu0 0.0
    %1467 = vmatpush2.msra.mxu0 0.0
    %1468 = vmatprep.subr.mxu0 0.0
    %1469 = vmatpush2.msra.mxu0 0.0
    %1470 = vmatprep.subr.mxu0 0.0
    %1471 = vmatpush2.msra.mxu0 0.0
    %1472 = vmatprep.subr.mxu0 0.0
    %1473 = vmatpush2.msra.mxu0 0.0
    %1474 = vmatprep.subr.mxu0 0.0
    %1475 = vmatpush2.msra.mxu0 0.0
    %1476 = vmatprep.subr.mxu0 0.0
    %1477 = vmatpush2.msra.mxu0 0.0
    %1478 = vmatprep.subr.mxu0 0.0
    %1479 = vmatpush2.msra.mxu0 0.0
    %1480 = vmatprep.subr.mxu0 0.0
    %1481 = vmatpush2.msra.mxu0 0.0
    %1482 = vmatprep.subr.mxu0 0.0
    %1483 = vmatpush2.msra.mxu0 0.0
    %1484 = vmatprep.mubr.f32.mxu0 0.0
    %1485 = vmatmul.mubr.f32.gmra.mxu0 %v1418
    %v1486 = vpop.f32.mrf.mxu0
    %v1487 = vadd.f32 0.0, %v1486
    %v1488 = vpop.f32.mrf.mxu0
    %1489 = vdwg.mxu0
    %v1490 = vmul.f32 %v1277, %v561
    %v1493 = vrot.slane %v1487, 7
    %v1494 = vsel %vm804, %v1493, %v1391
    %1495 = vrot.lane.b32.xlu0 %v1494, 12
    %v1496 = vpop.permute.xlu0 %1495
    %v1498 = vadd.f32 %v1490, %v1496
    %v1499 = vmul.f32 %v1498, %v1297
    %v1500 = vld [vmem:[%s7 + $0x4] sm:$0xf]
    %1502 = vrot.lane.b32.xlu0 %v1499, 116
    %v1503 = vpop.permute.xlu0 %1502
    %v1504 = vsel %vm603, %v1503, 0
    %vm1506 = vcmask 1043456
    %v1508 = vsel %vm1506, %v1500, 0
    %1510 = vmatprep.subr.mxu0 0.0
    %1511 = vmatpush1.msra.mxu0 0.0
    %1512 = vmatprep.subr.mxu0 0.0
    %1513 = vmatpush1.msra.mxu0 0.0
    %1514 = vmatprep.subr.mxu0 0.0
    %1515 = vmatpush1.msra.mxu0 0.0
    %1516 = vmatprep.subr.mxu0 0.0
    %1517 = vmatpush1.msra.mxu0 0.0
    %1518 = vmatprep.subr.mxu0 0.0
    %1519 = vmatpush1.msra.mxu0 0.0
    %1520 = vmatprep.subr.mxu0 0.0
    %1521 = vmatpush1.msra.mxu0 0.0
    %1522 = vmatprep.subr.mxu0 0.0
    %1523 = vmatpush1.msra.mxu0 0.0
    %1524 = vmatprep.subr.mxu0 0.0
    %1525 = vmatpush1.msra.mxu0 0.0
    %1526 = vmatprep.subr.mxu0 0.0
    %1527 = vmatpush1.msra.mxu0 0.0
    %1528 = vmatprep.subr.mxu0 0.0
    %1529 = vmatpush1.msra.mxu0 0.0
    %1530 = vmatprep.subr.mxu0 0.0
    %1531 = vmatpush1.msra.mxu0 0.0
    %1532 = vmatprep.subr.mxu0 0.0
    %1533 = vmatpush1.msra.mxu0 0.0
    %1534 = vmatprep.subr.mxu0 0.0
    %1535 = vmatpush1.msra.mxu0 0.0
    %1536 = vmatprep.subr.mxu0 0.0
    %1537 = vmatpush1.msra.mxu0 0.0
    %1538 = vmatprep.subr.mxu0 0.0
    %1539 = vmatpush1.msra.mxu0 0.0
    %1540 = vmatprep.subr.mxu0 0.0
    %1541 = vmatpush1.msra.mxu0 %v1508
    %1542 = vmatprep.subr.mxu0 0.0
    %1543 = vmatpush2.msra.mxu0 0.0
    %1544 = vmatprep.subr.mxu0 0.0
    %1545 = vmatpush2.msra.mxu0 0.0
    %1546 = vmatprep.subr.mxu0 0.0
    %1547 = vmatpush2.msra.mxu0 0.0
    %1548 = vmatprep.subr.mxu0 0.0
    %1549 = vmatpush2.msra.mxu0 0.0
    %1550 = vmatprep.subr.mxu0 0.0
    %1551 = vmatpush2.msra.mxu0 0.0
    %1552 = vmatprep.subr.mxu0 0.0
    %1553 = vmatpush2.msra.mxu0 0.0
    %1554 = vmatprep.subr.mxu0 0.0
    %1555 = vmatpush2.msra.mxu0 0.0
    %1556 = vmatprep.subr.mxu0 0.0
    %1557 = vmatpush2.msra.mxu0 0.0
    %1558 = vmatprep.subr.mxu0 0.0
    %1559 = vmatpush2.msra.mxu0 0.0
    %1560 = vmatprep.subr.mxu0 0.0
    %1561 = vmatpush2.msra.mxu0 0.0
    %1562 = vmatprep.subr.mxu0 0.0
    %1563 = vmatpush2.msra.mxu0 0.0
    %1564 = vmatprep.subr.mxu0 0.0
    %1565 = vmatpush2.msra.mxu0 0.0
    %1566 = vmatprep.subr.mxu0 0.0
    %1567 = vmatpush2.msra.mxu0 0.0
    %1568 = vmatprep.subr.mxu0 0.0
    %1569 = vmatpush2.msra.mxu0 0.0
    %1570 = vmatprep.subr.mxu0 0.0
    %1571 = vmatpush2.msra.mxu0 0.0
    %1572 = vmatprep.subr.mxu0 0.0
    %1573 = vmatpush2.msra.mxu0 0.0
    %1574 = vmatprep.mubr.f32.mxu0 0.0
    %1575 = vmatmul.mubr.f32.gmra.mxu0 %v1504
    %v1576 = vpop.f32.mrf.mxu0
    %v1577 = vadd.f32 0.0, %v1576
    %v1578 = vpop.f32.mrf.mxu0
    %1579 = vdwg.mxu0
    %1581 = vrot.lane.b32.xlu0 %v1037, 120
    %v1582 = vpop.permute.xlu0 %1581
    %v1583 = vsel %vm603, %v1582, 0
    %v1586 = vsel %vm1506, %v1038, 0
    %1588 = vmatprep.subr.mxu0 0.0
    %1589 = vmatpush1.msra.mxu0 0.0
    %1590 = vmatprep.subr.mxu0 0.0
    %1591 = vmatpush1.msra.mxu0 0.0
    %1592 = vmatprep.subr.mxu0 0.0
    %1593 = vmatpush1.msra.mxu0 0.0
    %1594 = vmatprep.subr.mxu0 0.0
    %1595 = vmatpush1.msra.mxu0 0.0
    %1596 = vmatprep.subr.mxu0 0.0
    %1597 = vmatpush1.msra.mxu0 0.0
    %1598 = vmatprep.subr.mxu0 0.0
    %1599 = vmatpush1.msra.mxu0 0.0
    %1600 = vmatprep.subr.mxu0 0.0
    %1601 = vmatpush1.msra.mxu0 0.0
    %1602 = vmatprep.subr.mxu0 0.0
    %1603 = vmatpush1.msra.mxu0 0.0
    %1604 = vmatprep.subr.mxu0 0.0
    %1605 = vmatpush1.msra.mxu0 0.0
    %1606 = vmatprep.subr.mxu0 0.0
    %1607 = vmatpush1.msra.mxu0 0.0
    %1608 = vmatprep.subr.mxu0 0.0
    %1609 = vmatpush1.msra.mxu0 0.0
    %1610 = vmatprep.subr.mxu0 0.0
    %1611 = vmatpush1.msra.mxu0 0.0
    %1612 = vmatprep.subr.mxu0 0.0
    %1613 = vmatpush1.msra.mxu0 0.0
    %1614 = vmatprep.subr.mxu0 0.0
    %1615 = vmatpush1.msra.mxu0 0.0
    %1616 = vmatprep.subr.mxu0 0.0
    %1617 = vmatpush1.msra.mxu0 0.0
    %1618 = vmatprep.subr.mxu0 0.0
    %1619 = vmatpush1.msra.mxu0 %v1586
    %1620 = vmatprep.subr.mxu0 0.0
    %1621 = vmatpush2.msra.mxu0 0.0
    %1622 = vmatprep.subr.mxu0 0.0
    %1623 = vmatpush2.msra.mxu0 0.0
    %1624 = vmatprep.subr.mxu0 0.0
    %1625 = vmatpush2.msra.mxu0 0.0
    %1626 = vmatprep.subr.mxu0 0.0
    %1627 = vmatpush2.msra.mxu0 0.0
    %1628 = vmatprep.subr.mxu0 0.0
    %1629 = vmatpush2.msra.mxu0 0.0
    %1630 = vmatprep.subr.mxu0 0.0
    %1631 = vmatpush2.msra.mxu0 0.0
    %1632 = vmatprep.subr.mxu0 0.0
    %1633 = vmatpush2.msra.mxu0 0.0
    %1634 = vmatprep.subr.mxu0 0.0
    %1635 = vmatpush2.msra.mxu0 0.0
    %1636 = vmatprep.subr.mxu0 0.0
    %1637 = vmatpush2.msra.mxu0 0.0
    %1638 = vmatprep.subr.mxu0 0.0
    %1639 = vmatpush2.msra.mxu0 0.0
    %1640 = vmatprep.subr.mxu0 0.0
    %1641 = vmatpush2.msra.mxu0 0.0
    %1642 = vmatprep.subr.mxu0 0.0
    %1643 = vmatpush2.msra.mxu0 0.0
    %1644 = vmatprep.subr.mxu0 0.0
    %1645 = vmatpush2.msra.mxu0 0.0
    %1646 = vmatprep.subr.mxu0 0.0
    %1647 = vmatpush2.msra.mxu0 0.0
    %1648 = vmatprep.subr.mxu0 0.0
    %1649 = vmatpush2.msra.mxu0 0.0
    %1650 = vmatprep.subr.mxu0 0.0
    %1651 = vmatpush2.msra.mxu0 0.0
    %1652 = vmatprep.mubr.f32.mxu0 0.0
    %1653 = vmatmul.mubr.f32.gmra.mxu0 %v1583
    %v1654 = vpop.f32.mrf.mxu0
    %v1655 = vadd.f32 %v1577, %v1654
    %v1656 = vpop.f32.mrf.mxu0
    %1657 = vdwg.mxu0
    %v1658 = vld [vmem:[%s8] sm:$0x1]
    %v1660 = vlaneseq
    %v1661 = vshrl.u32 %v1660, 7
    %v1662 = vsub.s32 0, %v1661
    %v1663 = vrot.slane %v1658, %v1662
    %v1665 = vadd.f32 %v1655, %v1663
    %vm1666 = vcmask 123904
    %1667 = vst.msk [vmem:[#allocation4] sm:$0x3] %vm1666, %v1665
    // Predicated region
    $region38: #{tpu_custom_call.1} parent=1 // pred_check
      _
    $region39: #{tpu_custom_call.1} parent=1 // pred_check_branch
      %1669 = sbr.rel (0) target = $region41
    $region40: #{tpu_custom_call.1} parent=1 // pred_region
      %s1671 = ssub.s32 32, 32
      %1672 = vsyncadd [#allocation5], %s1671
      %s1674 = sshll.u32 [#allocation4], 4
      %s1675 = int_to_ptr.vmem [resolvable:$true] %s1674
      %1677 = dma.vmem_to_hbm [thread:$0]  %s1675, 32, %s9, [#allocation5]
    $region41: #{tpu_custom_call.1} parent=1 // pred_fallthru
      _
    // Predicated region
    $region42: #{tpu_custom_call.1} parent=1 // pred_check
      _
    $region43: #{tpu_custom_call.1} parent=1 // pred_check_branch
      %1679 = sbr.rel (0) target = $region45
    $region44: #{tpu_custom_call.1} parent=1 // pred_region
      %1680 = dma.done [#allocation5], 32
    $region45: #{tpu_custom_call.1} parent=1 // pred_fallthru
      _
    %1681 = vsyncpa [#allocation5], 1

</llo_original>
